<compile_context>
chip_gen: v7x
topology: tpu7x:2x2x1
jax: 0.10.0
libtpu: 0.0.40
codegen_flags: <defaults>
</compile_context>

<pallas_src>
import math
import numpy as np

import jax
import jax.numpy as jnp
from jax import lax
from jax.experimental import pallas as pl
from jax.experimental.pallas import tpu as pltpu

K1, P1 = 7, 3       # conv1: kernel 7, padding 3
K2, P2 = 17, 8      # conv2: kernel 17, padding 8
KPAD1 = 256         # lane-padded contraction dim for the conv1 matmul (>= K1*Wp1)


# --------------------------------------------------------------------------
# Fused kernel: conv1 -> conv2(mean-folded) -> neighbor attention -> LayerNorm
# --------------------------------------------------------------------------
def make_kernel(C, H, W, D):
    Wp2 = W + 2 * P2
    CW = C * Wp2                     # channel-packed conv1 row width (== 128 here)

    def kernel(xcol_ref, x_ref, g_ref, b1row_ref, t_ref, b2row_ref,
               wn_t_ref, bn_ref, wr_t_ref, br_ref, gamma_ref, beta_ref,
               out_ref, adj_ref):
        f32 = jnp.float32

        # ---- conv1: ONE matmul.  Output layout (H, C*Wp2): channel c lives at
        # lanes [c*Wp2, (c+1)*Wp2); the W-direction zero padding needed by conv2
        # is implicit (G / b1row are zero on the pad lanes).
        y1 = jnp.dot(xcol_ref[0], g_ref[...], preferred_element_type=f32)
        y1 = y1 + b1row_ref[...]                                   # (H, CW)

        # ---- implicit H-direction zero padding (sublane-aligned: P2 == 8).
        zrows = jnp.zeros((P2, CW), f32)
        ypad = jnp.concatenate([zrows, y1, zrows], axis=0)         # (H+2*P2, CW)

        # ---- conv2 (channel-mean folded): ONE matmul.  In-register im2col:
        # lane-axis concat of the K2 sublane-shifted (H, CW) windows.
        lhs2 = jnp.concatenate(
            [ypad[dy:dy + H, :] for dy in range(K2)], axis=1)      # (H, K2*CW)
        a_full = jnp.dot(lhs2.astype(jnp.bfloat16), t_ref[...],
                         preferred_element_type=f32)               # (H, 128)
        A = (a_full + b2row_ref[...])[:, :W]                       # (H, W)
        adj_ref[0] = A

        # ---- neighborhood attention + LayerNorm (A stays in VMEM, f32 math).
        x = x_ref[0]                                               # (N, D)
        ne = jnp.tanh(jnp.dot(x, wn_t_ref[...],
                              preferred_element_type=f32) + bn_ref[...])
        # TODO(synk): dropout is inference-mode identity (no mask / 1/(1-p)).
        ns = jnp.dot(A, ne, preferred_element_type=f32)
        cat = x + ns
        h = jnp.tanh(jnp.dot(cat, wr_t_ref[...],
                             preferred_element_type=f32) + br_ref[...])
        mu = jnp.mean(h, axis=-1, keepdims=True)
        var = jnp.mean((h - mu) ** 2, axis=-1, keepdims=True)
        out_ref[0] = ((h - mu) * lax.rsqrt(var + 1e-5)
                      * gamma_ref[...] + beta_ref[...])

    return kernel


# --------------------------------------------------------------------------
# One-time, weight-only preprocessing (hoisted out of the per-call wrapper).
# --------------------------------------------------------------------------
def precompute_banks(params, N):
    (w1, b1, w2, b2, wn, bn, wr, br, gamma, beta) = params
    H = W = N
    C = w1.shape[0]
    D = wn.shape[0]
    Wp1 = W + 2 * P1
    Wp2 = W + 2 * P2
    CW = C * Wp2

    f32, bf16 = jnp.float32, jnp.bfloat16
    w1 = w1.astype(f32); b1 = b1.astype(f32)
    w2 = w2.astype(f32); b2 = b2.astype(f32)

    # mean over conv2 output channels is linear -> fold it into the weights/bias.
    w2m = jnp.mean(w2, axis=0)                                     # (C, K2, K2)

    # 0/1 Toeplitz selectors (trace-time numpy; never enter the kernel).
    S1 = np.zeros((K1, Wp1, W), np.float32)
    for dx in range(K1):
        S1[dx, dx:dx + W, :] = np.eye(W, dtype=np.float32)
    S2 = np.zeros((K2, Wp2, W), np.float32)
    for dx in range(K2):
        S2[dx, dx:dx + W, :] = np.eye(W, dtype=np.float32)

    # conv1 bank: G[dy*Wp1 + m, c*Wp2 + P2 + j] = w1[c, 0, dy, m - j]
    G = jnp.einsum('cdx,xmj->dmcj', w1[:, 0], jnp.asarray(S1))     # (K1,Wp1,C,W)
    G = jnp.pad(G, ((0, 0), (0, 0), (0, 0), (P2, P2)))             # (K1,Wp1,C,Wp2)
    G = G.reshape(K1 * Wp1, CW)
    G = jnp.pad(G, ((0, KPAD1 - K1 * Wp1), (0, 0))).astype(bf16)   # (256, CW)

    # conv2 bank (mean-folded): T2[dy*CW + c*Wp2 + p, j] = w2m[c, dy, p - j];
    # last dim zero-padded to 128 lanes for a dense layout / DMA.
    T = jnp.einsum('cdx,xpj->dcpj', w2m, jnp.asarray(S2))          # (K2,C,Wp2,W)
    T2 = T.reshape(K2 * CW, W)
    T2p = jnp.pad(T2, ((0, 0), (0, 128 - W))).astype(bf16)         # (K2*CW, 128)

    # conv1 bias on the packed lanes (zero on pad lanes); conv2 mean-bias row.
    b1row = jnp.pad(jnp.broadcast_to(b1[:, None], (C, W)),
                    ((0, 0), (P2, P2))).reshape(1, CW)             # (1, CW) f32
    b2row = jnp.broadcast_to(jnp.mean(b2), (1, 128)).astype(f32)   # (1, 128) f32

    return (G, b1row, T2p, b2row,
            wn.T.astype(f32), bn.reshape(1, D).astype(f32),
            wr.T.astype(f32), br.reshape(1, D).astype(f32),
            gamma.reshape(1, D).astype(f32), beta.reshape(1, D).astype(f32))


# --------------------------------------------------------------------------
# Per-call wrapper: activation im2col + the single fused pallas_call.
# --------------------------------------------------------------------------
def conv_attn_block(x, bp_adj, banks):
    (G, b1row, T2p, b2row, wn_t, bn2, wr_t, br2, gamma2, beta2) = banks
    B, N, D = x.shape
    H = W = N
    CW = G.shape[1]
    f32, bf16 = jnp.float32, jnp.bfloat16

    # H-direction im2col of the adjacency (lane-dense, zero-padded to KPAD1).
    Wp1 = W + 2 * P1
    xpad1 = jnp.pad(bp_adj.astype(f32), ((0, 0), (P1, P1), (P1, P1)))   # (B,H+6,Wp1)
    xcol = jnp.concatenate([xpad1[:, dy:dy + H, :] for dy in range(K1)],
                           axis=2)                                      # (B,H,K1*Wp1)
    xcol = jnp.pad(xcol, ((0, 0), (0, 0), (0, KPAD1 - K1 * Wp1))).astype(bf16)

    C = CW // (W + 2 * P2)
    kernel = make_kernel(C, H, W, D)

    out, adj = pl.pallas_call(
        kernel,
        out_shape=(jax.ShapeDtypeStruct((B, N, D), f32),
                   jax.ShapeDtypeStruct((B, H, W), f32)),
        grid=(B,),
        in_specs=[
            pl.BlockSpec((1, H, KPAD1), lambda b: (b, 0, 0)),   # xcol (bf16)
            pl.BlockSpec((1, N, D), lambda b: (b, 0, 0)),       # x
            pl.BlockSpec((KPAD1, CW), lambda b: (0, 0)),        # conv1 bank G (bf16)
            pl.BlockSpec((1, CW), lambda b: (0, 0)),            # conv1 bias row
            pl.BlockSpec((K2 * CW, 128), lambda b: (0, 0)),     # conv2 bank (bf16)
            pl.BlockSpec((1, 128), lambda b: (0, 0)),           # conv2 bias row
            pl.BlockSpec((D, D), lambda b: (0, 0)),             # Wn^T
            pl.BlockSpec((1, D), lambda b: (0, 0)),             # bn
            pl.BlockSpec((D, D), lambda b: (0, 0)),             # Wr^T
            pl.BlockSpec((1, D), lambda b: (0, 0)),             # br
            pl.BlockSpec((1, D), lambda b: (0, 0)),             # gamma
            pl.BlockSpec((1, D), lambda b: (0, 0)),             # beta
        ],
        out_specs=(pl.BlockSpec((1, N, D), lambda b: (b, 0, 0)),
                   pl.BlockSpec((1, H, W), lambda b: (b, 0, 0))),
        compiler_params=pltpu.CompilerParams(
            dimension_semantics=("parallel",)),
    )(xcol, x.astype(f32), G, b1row, T2p, b2row,
      wn_t, bn2, wr_t, br2, gamma2, beta2)

    return out, adj


# --------------------------------------------------------------------------
# Pure-JAX reference (numerical sanity check)
# --------------------------------------------------------------------------
def reference(x, bp_adj, params):
    (w1, b1, w2, b2, wn, bn, wr, br, gamma, beta) = params
    hp = lax.Precision.HIGHEST
    y = lax.conv_general_dilated(bp_adj[:, None, :, :], w1, (1, 1),
                                 [(P1, P1), (P1, P1)],
                                 dimension_numbers=('NCHW', 'OIHW', 'NCHW'),
                                 precision=hp) + b1[None, :, None, None]
    y = lax.conv_general_dilated(y, w2, (1, 1), [(P2, P2), (P2, P2)],
                                 dimension_numbers=('NCHW', 'OIHW', 'NCHW'),
                                 precision=hp) + b2[None, :, None, None]
    A = jnp.mean(y, axis=1)
    ne = jnp.tanh(jnp.einsum('bnd,ed->bne', x, wn, precision=hp) + bn)
    ns = jnp.einsum('bij,bjd->bid', A, ne, precision=hp)
    cat = x + ns
    h = jnp.tanh(jnp.einsum('bnd,ed->bne', cat, wr, precision=hp) + br)
    mu = jnp.mean(h, axis=-1, keepdims=True)
    var = jnp.mean((h - mu) ** 2, axis=-1, keepdims=True)
    out = (h - mu) / jnp.sqrt(var + 1e-5) * gamma + beta
    return out, A


if __name__ == "__main__":
    B, N, D, C = 2, 16, 32, 4   # batch, nodes (= d1 = d2), mlp_size, adj_conv_channels

    key = jax.random.PRNGKey(0)
    ks = jax.random.split(key, 12)

    x = jax.random.normal(ks[0], (B, N, D), jnp.float32)
    bp_adj = jax.random.normal(ks[1], (B, N, N), jnp.float32)

    # deterministic synthetic parameters (shapes match the nn.Module __init__)
    w1 = jax.random.normal(ks[2], (C, 1, K1, K1), jnp.float32) * (1.0 / K1)
    b1 = jax.random.normal(ks[3], (C,), jnp.float32) * 0.1
    w2 = jax.random.normal(ks[4], (C, C, K2, K2), jnp.float32) * (1.0 / (K2 * math.sqrt(C)))
    b2 = jax.random.normal(ks[5], (C,), jnp.float32) * 0.1
    wn = jax.random.normal(ks[6], (D, D), jnp.float32) * (1.0 / math.sqrt(D))
    bn = jax.random.normal(ks[7], (D,), jnp.float32) * 0.1
    wr = jax.random.normal(ks[8], (D, D), jnp.float32) * (1.0 / math.sqrt(D))
    br = jax.random.normal(ks[9], (D,), jnp.float32) * 0.1
    gamma = jnp.ones((D,), jnp.float32)
    beta = jnp.zeros((D,), jnp.float32)
    params = (w1, b1, w2, b2, wn, bn, wr, br, gamma, beta)

    # One-time weight-only preprocessing (banks in final layout / dtype).
    banks = precompute_banks(params, N)
    banks = jax.block_until_ready(banks)

    out, adj = conv_attn_block(x, bp_adj, banks)
    jax.block_until_ready((out, adj))

    out_ref, adj_ref = reference(x, bp_adj, params)
    np.testing.assert_allclose(np.asarray(adj), np.asarray(adj_ref), atol=5e-2, rtol=5e-2)
    np.testing.assert_allclose(np.asarray(out), np.asarray(out_ref), atol=5e-2, rtol=5e-2)

    print("KERNEL_OK")
</pallas_src>

<mosaic_0001>
module attributes {stable_mosaic.version = 11 : i64} {
  func.func @kernel(%arg0: i32, %arg1: memref<1x16x256xbf16, #tpu.memory_space<vmem>>, %arg2: memref<1x16x32xf32, #tpu.memory_space<vmem>>, %arg3: memref<256x128xbf16, #tpu.memory_space<vmem>>, %arg4: memref<1x128xf32, #tpu.memory_space<vmem>>, %arg5: memref<2176x128xbf16, #tpu.memory_space<vmem>>, %arg6: memref<1x128xf32, #tpu.memory_space<vmem>>, %arg7: memref<32x32xf32, #tpu.memory_space<vmem>>, %arg8: memref<1x32xf32, #tpu.memory_space<vmem>>, %arg9: memref<32x32xf32, #tpu.memory_space<vmem>>, %arg10: memref<1x32xf32, #tpu.memory_space<vmem>>, %arg11: memref<1x32xf32, #tpu.memory_space<vmem>>, %arg12: memref<1x32xf32, #tpu.memory_space<vmem>>, %arg13: memref<1x16x32xf32, #tpu.memory_space<vmem>>, %arg14: memref<1x16x16xf32, #tpu.memory_space<vmem>>) attributes {dimension_semantics = [#tpu.dimension_semantics<parallel>], iteration_bounds = array<i64: 2>, scalar_prefetch = 0 : i64, scratch_operands = 0 : i64, tpu.core_type = #tpu.core_type<tc>, window_params = [{transform_indices = @transform_0, window_bounds = array<i64: 1, 16, 256>}, {transform_indices = @transform_1, window_bounds = array<i64: 1, 16, 32>}, {pipeline_mode = #tpu.pipeline_mode<synchronous>, transform_indices = @transform_2, window_bounds = array<i64: 256, 128>}, {pipeline_mode = #tpu.pipeline_mode<synchronous>, transform_indices = @transform_3, window_bounds = array<i64: 1, 128>}, {pipeline_mode = #tpu.pipeline_mode<synchronous>, transform_indices = @transform_4, window_bounds = array<i64: 2176, 128>}, {pipeline_mode = #tpu.pipeline_mode<synchronous>, transform_indices = @transform_5, window_bounds = array<i64: 1, 128>}, {pipeline_mode = #tpu.pipeline_mode<synchronous>, transform_indices = @transform_6, window_bounds = array<i64: 32, 32>}, {pipeline_mode = #tpu.pipeline_mode<synchronous>, transform_indices = @transform_7, window_bounds = array<i64: 1, 32>}, {pipeline_mode = #tpu.pipeline_mode<synchronous>, transform_indices = @transform_8, window_bounds = array<i64: 32, 32>}, {pipeline_mode = #tpu.pipeline_mode<synchronous>, transform_indices = @transform_9, window_bounds = array<i64: 1, 32>}, {pipeline_mode = #tpu.pipeline_mode<synchronous>, transform_indices = @transform_10, window_bounds = array<i64: 1, 32>}, {pipeline_mode = #tpu.pipeline_mode<synchronous>, transform_indices = @transform_11, window_bounds = array<i64: 1, 32>}, {transform_indices = @transform_12, window_bounds = array<i64: 1, 16, 32>}, {transform_indices = @transform_13, window_bounds = array<i64: 1, 16, 16>}]} {
    %c0 = arith.constant 0 : index
    %c0_0 = arith.constant 0 : index
    %c0_1 = arith.constant 0 : index
    %0 = vector.load %arg1[%c0, %c0_0, %c0_1] : memref<1x16x256xbf16, #tpu.memory_space<vmem>>, vector<1x16x256xbf16>
    %1 = vector.shape_cast %0 : vector<1x16x256xbf16> to vector<16x256xbf16>
    %c0_2 = arith.constant 0 : index
    %c0_3 = arith.constant 0 : index
    %2 = vector.load %arg3[%c0_2, %c0_3] : memref<256x128xbf16, #tpu.memory_space<vmem>>, vector<256x128xbf16>
    %cst = arith.constant dense<0.000000e+00> : vector<16x128xf32>
    %3 = tpu.matmul %1, %2, %cst {dimension_numbers = #tpu.dot_dimension_numbers<[1], [0], [0], [1], [0, 0, 1, 1], [], []>} : vector<16x256xbf16>, vector<256x128xbf16>, vector<16x128xf32> -> vector<16x128xf32>
    %c0_4 = arith.constant 0 : index
    %c0_5 = arith.constant 0 : index
    %4 = vector.load %arg4[%c0_4, %c0_5] : memref<1x128xf32, #tpu.memory_space<vmem>>, vector<1x128xf32>
    %5 = vector.broadcast %4 : vector<1x128xf32> to vector<16x128xf32>
    %6 = arith.addf %3, %5 : vector<16x128xf32>
    %cst_6 = arith.constant 0.000000e+00 : f32
    %7 = vector.broadcast %cst_6 : f32 to vector<8x128xf32>
    %8 = tpu.concatenate %7, %6, %7 in 0 : vector<8x128xf32>, vector<16x128xf32>, vector<8x128xf32> -> vector<32x128xf32>
    %9 = vector.extract_strided_slice %8 {offsets = [0, 0], sizes = [16, 128], strides = [1, 1]} : vector<32x128xf32> to vector<16x128xf32>
    %10 = vector.extract_strided_slice %8 {offsets = [1, 0], sizes = [16, 128], strides = [1, 1]} : vector<32x128xf32> to vector<16x128xf32>
    %11 = vector.extract_strided_slice %8 {offsets = [2, 0], sizes = [16, 128], strides = [1, 1]} : vector<32x128xf32> to vector<16x128xf32>
    %12 = vector.extract_strided_slice %8 {offsets = [3, 0], sizes = [16, 128], strides = [1, 1]} : vector<32x128xf32> to vector<16x128xf32>
    %13 = vector.extract_strided_slice %8 {offsets = [4, 0], sizes = [16, 128], strides = [1, 1]} : vector<32x128xf32> to vector<16x128xf32>
    %14 = vector.extract_strided_slice %8 {offsets = [5, 0], sizes = [16, 128], strides = [1, 1]} : vector<32x128xf32> to vector<16x128xf32>
    %15 = vector.extract_strided_slice %8 {offsets = [6, 0], sizes = [16, 128], strides = [1, 1]} : vector<32x128xf32> to vector<16x128xf32>
    %16 = vector.extract_strided_slice %8 {offsets = [7, 0], sizes = [16, 128], strides = [1, 1]} : vector<32x128xf32> to vector<16x128xf32>
    %17 = vector.extract_strided_slice %8 {offsets = [8, 0], sizes = [16, 128], strides = [1, 1]} : vector<32x128xf32> to vector<16x128xf32>
    %18 = vector.extract_strided_slice %8 {offsets = [9, 0], sizes = [16, 128], strides = [1, 1]} : vector<32x128xf32> to vector<16x128xf32>
    %19 = vector.extract_strided_slice %8 {offsets = [10, 0], sizes = [16, 128], strides = [1, 1]} : vector<32x128xf32> to vector<16x128xf32>
    %20 = vector.extract_strided_slice %8 {offsets = [11, 0], sizes = [16, 128], strides = [1, 1]} : vector<32x128xf32> to vector<16x128xf32>
    %21 = vector.extract_strided_slice %8 {offsets = [12, 0], sizes = [16, 128], strides = [1, 1]} : vector<32x128xf32> to vector<16x128xf32>
    %22 = vector.extract_strided_slice %8 {offsets = [13, 0], sizes = [16, 128], strides = [1, 1]} : vector<32x128xf32> to vector<16x128xf32>
    %23 = vector.extract_strided_slice %8 {offsets = [14, 0], sizes = [16, 128], strides = [1, 1]} : vector<32x128xf32> to vector<16x128xf32>
    %24 = vector.extract_strided_slice %8 {offsets = [15, 0], sizes = [16, 128], strides = [1, 1]} : vector<32x128xf32> to vector<16x128xf32>
    %25 = vector.extract_strided_slice %8 {offsets = [16, 0], sizes = [16, 128], strides = [1, 1]} : vector<32x128xf32> to vector<16x128xf32>
    %26 = tpu.concatenate %9, %10, %11, %12, %13, %14, %15, %16, %17, %18, %19, %20, %21, %22, %23, %24 in 1 : vector<16x128xf32>, vector<16x128xf32>, vector<16x128xf32>, vector<16x128xf32>, vector<16x128xf32>, vector<16x128xf32>, vector<16x128xf32>, vector<16x128xf32>, vector<16x128xf32>, vector<16x128xf32>, vector<16x128xf32>, vector<16x128xf32>, vector<16x128xf32>, vector<16x128xf32>, vector<16x128xf32>, vector<16x128xf32> -> vector<16x2048xf32>
    %27 = tpu.concatenate %26, %25 in 1 : vector<16x2048xf32>, vector<16x128xf32> -> vector<16x2176xf32>
    %28 = arith.truncf %27 : vector<16x2176xf32> to vector<16x2176xbf16>
    %c0_7 = arith.constant 0 : index
    %c0_8 = arith.constant 0 : index
    %29 = vector.load %arg5[%c0_7, %c0_8] : memref<2176x128xbf16, #tpu.memory_space<vmem>>, vector<2176x128xbf16>
    %cst_9 = arith.constant dense<0.000000e+00> : vector<16x128xf32>
    %30 = tpu.matmul %28, %29, %cst_9 {dimension_numbers = #tpu.dot_dimension_numbers<[1], [0], [0], [1], [0, 0, 1, 1], [], []>} : vector<16x2176xbf16>, vector<2176x128xbf16>, vector<16x128xf32> -> vector<16x128xf32>
    %c0_10 = arith.constant 0 : index
    %c0_11 = arith.constant 0 : index
    %31 = vector.load %arg6[%c0_10, %c0_11] : memref<1x128xf32, #tpu.memory_space<vmem>>, vector<1x128xf32>
    %32 = vector.broadcast %31 : vector<1x128xf32> to vector<16x128xf32>
    %33 = arith.addf %30, %32 : vector<16x128xf32>
    %34 = vector.extract_strided_slice %33 {offsets = [0, 0], sizes = [16, 16], strides = [1, 1]} : vector<16x128xf32> to vector<16x16xf32>
    %c0_12 = arith.constant 0 : index
    %c0_13 = arith.constant 0 : index
    %c0_14 = arith.constant 0 : index
    %35 = vector.load %arg14[%c0_12, %c0_13, %c0_14] : memref<1x16x16xf32, #tpu.memory_space<vmem>>, vector<1x16x16xf32>
    %36 = vector.shape_cast %35 : vector<1x16x16xf32> to vector<16x16xf32>
    %37 = vector.shape_cast %34 : vector<16x16xf32> to vector<1x16x16xf32>
    tpu.vector_store %arg14[%c0_12, %c0_13, %c0_14], %37 {strides = array<i32>} : memref<1x16x16xf32, #tpu.memory_space<vmem>>, vector<1x16x16xf32>,
    %c0_15 = arith.constant 0 : index
    %c0_16 = arith.constant 0 : index
    %c0_17 = arith.constant 0 : index
    %38 = vector.load %arg2[%c0_15, %c0_16, %c0_17] : memref<1x16x32xf32, #tpu.memory_space<vmem>>, vector<1x16x32xf32>
    %39 = vector.shape_cast %38 : vector<1x16x32xf32> to vector<16x32xf32>
    %c0_18 = arith.constant 0 : index
    %c0_19 = arith.constant 0 : index
    %40 = vector.load %arg7[%c0_18, %c0_19] : memref<32x32xf32, #tpu.memory_space<vmem>>, vector<32x32xf32>
    %cst_20 = arith.constant dense<0.000000e+00> : vector<16x32xf32>
    %41 = tpu.matmul %39, %40, %cst_20 {dimension_numbers = #tpu.dot_dimension_numbers<[1], [0], [0], [1], [0, 0, 1, 1], [], []>} : vector<16x32xf32>, vector<32x32xf32>, vector<16x32xf32> -> vector<16x32xf32>
    %c0_21 = arith.constant 0 : index
    %c0_22 = arith.constant 0 : index
    %42 = vector.load %arg8[%c0_21, %c0_22] : memref<1x32xf32, #tpu.memory_space<vmem>>, vector<1x32xf32>
    %43 = vector.broadcast %42 : vector<1x32xf32> to vector<16x32xf32>
    %44 = arith.addf %41, %43 : vector<16x32xf32>
    %45 = math.tanh %44 : vector<16x32xf32>
    %cst_23 = arith.constant dense<0.000000e+00> : vector<16x32xf32>
    %46 = tpu.matmul %34, %45, %cst_23 {dimension_numbers = #tpu.dot_dimension_numbers<[1], [0], [0], [1], [0, 0, 1, 1], [], []>} : vector<16x16xf32>, vector<16x32xf32>, vector<16x32xf32> -> vector<16x32xf32>
    %47 = arith.addf %39, %46 : vector<16x32xf32>
    %c0_24 = arith.constant 0 : index
    %c0_25 = arith.constant 0 : index
    %48 = vector.load %arg9[%c0_24, %c0_25] : memref<32x32xf32, #tpu.memory_space<vmem>>, vector<32x32xf32>
    %cst_26 = arith.constant dense<0.000000e+00> : vector<16x32xf32>
    %49 = tpu.matmul %47, %48, %cst_26 {dimension_numbers = #tpu.dot_dimension_numbers<[1], [0], [0], [1], [0, 0, 1, 1], [], []>} : vector<16x32xf32>, vector<32x32xf32>, vector<16x32xf32> -> vector<16x32xf32>
    %c0_27 = arith.constant 0 : index
    %c0_28 = arith.constant 0 : index
    %50 = vector.load %arg10[%c0_27, %c0_28] : memref<1x32xf32, #tpu.memory_space<vmem>>, vector<1x32xf32>
    %51 = vector.broadcast %50 : vector<1x32xf32> to vector<16x32xf32>
    %52 = arith.addf %49, %51 : vector<16x32xf32>
    %53 = math.tanh %52 : vector<16x32xf32>
    %cst_29 = arith.constant dense<0.000000e+00> : vector<16xf32>
    %54 = vector.multi_reduction <add>, %53, %cst_29 [1] : vector<16x32xf32> to vector<16xf32>
    %55 = vector.shape_cast %54 : vector<16xf32> to vector<16x1xf32>
    %cst_30 = arith.constant 3.200000e+01 : f32
    %56 = vector.broadcast %cst_30 : f32 to vector<16x1xf32>
    %57 = arith.divf %55, %56 : vector<16x1xf32>
    %58 = vector.broadcast %57 : vector<16x1xf32> to vector<16x32xf32>
    %59 = arith.subf %53, %58 : vector<16x32xf32>
    %60 = arith.mulf %59, %59 : vector<16x32xf32>
    %cst_31 = arith.constant dense<0.000000e+00> : vector<16xf32>
    %61 = vector.multi_reduction <add>, %60, %cst_31 [1] : vector<16x32xf32> to vector<16xf32>
    %62 = vector.shape_cast %61 : vector<16xf32> to vector<16x1xf32>
    %cst_32 = arith.constant 3.200000e+01 : f32
    %63 = vector.broadcast %cst_32 : f32 to vector<16x1xf32>
    %64 = arith.divf %62, %63 : vector<16x1xf32>
    %65 = vector.broadcast %57 : vector<16x1xf32> to vector<16x32xf32>
    %66 = arith.subf %53, %65 : vector<16x32xf32>
    %cst_33 = arith.constant 9.99999974E-6 : f32
    %67 = vector.broadcast %cst_33 : f32 to vector<16x1xf32>
    %68 = arith.addf %64, %67 : vector<16x1xf32>
    %69 = math.rsqrt %68 : vector<16x1xf32>
    %70 = vector.broadcast %69 : vector<16x1xf32> to vector<16x32xf32>
    %71 = arith.mulf %66, %70 : vector<16x32xf32>
    %c0_34 = arith.constant 0 : index
    %c0_35 = arith.constant 0 : index
    %72 = vector.load %arg11[%c0_34, %c0_35] : memref<1x32xf32, #tpu.memory_space<vmem>>, vector<1x32xf32>
    %73 = vector.broadcast %72 : vector<1x32xf32> to vector<16x32xf32>
    %74 = arith.mulf %71, %73 : vector<16x32xf32>
    %c0_36 = arith.constant 0 : index
    %c0_37 = arith.constant 0 : index
    %75 = vector.load %arg12[%c0_36, %c0_37] : memref<1x32xf32, #tpu.memory_space<vmem>>, vector<1x32xf32>
    %76 = vector.broadcast %75 : vector<1x32xf32> to vector<16x32xf32>
    %77 = arith.addf %74, %76 : vector<16x32xf32>
    %c0_38 = arith.constant 0 : index
    %c0_39 = arith.constant 0 : index
    %c0_40 = arith.constant 0 : index
    %78 = vector.load %arg13[%c0_38, %c0_39, %c0_40] : memref<1x16x32xf32, #tpu.memory_space<vmem>>, vector<1x16x32xf32>
    %79 = vector.shape_cast %78 : vector<1x16x32xf32> to vector<16x32xf32>
    %80 = vector.shape_cast %77 : vector<16x32xf32> to vector<1x16x32xf32>
    tpu.vector_store %arg13[%c0_38, %c0_39, %c0_40], %80 {strides = array<i32>} : memref<1x16x32xf32, #tpu.memory_space<vmem>>, vector<1x16x32xf32>,
    return
  }
  func.func @transform_0(%arg0: i32) -> (i32, i32, i32) {
    %c0_i32 = arith.constant 0 : i32
    %c0_i32_0 = arith.constant 0 : i32
    %c0_i32_1 = arith.constant 0 : i32
    return %arg0, %c0_i32, %c0_i32_0 : i32, i32, i32
  }
  func.func @transform_1(%arg0: i32) -> (i32, i32, i32) {
    %c0_i32 = arith.constant 0 : i32
    %c0_i32_0 = arith.constant 0 : i32
    %c0_i32_1 = arith.constant 0 : i32
    return %arg0, %c0_i32, %c0_i32_0 : i32, i32, i32
  }
  func.func @transform_2(%arg0: i32) -> (i32, i32) {
    %c0_i32 = arith.constant 0 : i32
    %c0_i32_0 = arith.constant 0 : i32
    %c0_i32_1 = arith.constant 0 : i32
    return %c0_i32, %c0_i32_0 : i32, i32
  }
  func.func @transform_3(%arg0: i32) -> (i32, i32) {
    %c0_i32 = arith.constant 0 : i32
    %c0_i32_0 = arith.constant 0 : i32
    %c0_i32_1 = arith.constant 0 : i32
    return %c0_i32, %c0_i32_0 : i32, i32
  }
  func.func @transform_4(%arg0: i32) -> (i32, i32) {
    %c0_i32 = arith.constant 0 : i32
    %c0_i32_0 = arith.constant 0 : i32
    %c0_i32_1 = arith.constant 0 : i32
    return %c0_i32, %c0_i32_0 : i32, i32
  }
  func.func @transform_5(%arg0: i32) -> (i32, i32) {
    %c0_i32 = arith.constant 0 : i32
    %c0_i32_0 = arith.constant 0 : i32
    %c0_i32_1 = arith.constant 0 : i32
    return %c0_i32, %c0_i32_0 : i32, i32
  }
  func.func @transform_6(%arg0: i32) -> (i32, i32) {
    %c0_i32 = arith.constant 0 : i32
    %c0_i32_0 = arith.constant 0 : i32
    %c0_i32_1 = arith.constant 0 : i32
    return %c0_i32, %c0_i32_0 : i32, i32
  }
  func.func @transform_7(%arg0: i32) -> (i32, i32) {
    %c0_i32 = arith.constant 0 : i32
    %c0_i32_0 = arith.constant 0 : i32
    %c0_i32_1 = arith.constant 0 : i32
    return %c0_i32, %c0_i32_0 : i32, i32
  }
  func.func @transform_8(%arg0: i32) -> (i32, i32) {
    %c0_i32 = arith.constant 0 : i32
    %c0_i32_0 = arith.constant 0 : i32
    %c0_i32_1 = arith.constant 0 : i32
    return %c0_i32, %c0_i32_0 : i32, i32
  }
  func.func @transform_9(%arg0: i32) -> (i32, i32) {
    %c0_i32 = arith.constant 0 : i32
    %c0_i32_0 = arith.constant 0 : i32
    %c0_i32_1 = arith.constant 0 : i32
    return %c0_i32, %c0_i32_0 : i32, i32
  }
  func.func @transform_10(%arg0: i32) -> (i32, i32) {
    %c0_i32 = arith.constant 0 : i32
    %c0_i32_0 = arith.constant 0 : i32
    %c0_i32_1 = arith.constant 0 : i32
    return %c0_i32, %c0_i32_0 : i32, i32
  }
  func.func @transform_11(%arg0: i32) -> (i32, i32) {
    %c0_i32 = arith.constant 0 : i32
    %c0_i32_0 = arith.constant 0 : i32
    %c0_i32_1 = arith.constant 0 : i32
    return %c0_i32, %c0_i32_0 : i32, i32
  }
  func.func @transform_12(%arg0: i32) -> (i32, i32, i32) {
    %c0_i32 = arith.constant 0 : i32
    %c0_i32_0 = arith.constant 0 : i32
    %c0_i32_1 = arith.constant 0 : i32
    return %arg0, %c0_i32, %c0_i32_0 : i32, i32, i32
  }
  func.func @transform_13(%arg0: i32) -> (i32, i32, i32) {
    %c0_i32 = arith.constant 0 : i32
    %c0_i32_0 = arith.constant 0 : i32
    %c0_i32_1 = arith.constant 0 : i32
    return %arg0, %c0_i32, %c0_i32_0 : i32, i32, i32
  }
}

</mosaic_0001>

<llo_original>
// kernel: tpu_custom_call.1
$region0: #{tpu_custom_call.1}
  #allocation0 [shape = 'u32[]', space=smem, size = 0x4, offset = 0x4, fixed_abs, tag = 'smem constant byte address 0x4 - core index']
  #allocation1 [shape = 'u32[144,128]{1,0:T(1,128)}', space=vmem, size = 0x12000, scoped, tag = 'internal scratch']
  %s0 = inlined_call_operand.hbm [shape: bf16[2,16,256], index: 0, kind: input, shape index: {}]
  %s1 = inlined_call_operand.hbm [shape: f32[2,16,32], index: 1, kind: input, shape index: {}]
  %s2 = inlined_call_operand.hbm [shape: bf16[256,128], index: 2, kind: input, shape index: {}]
  %s3 = inlined_call_operand.vmem [shape: f32[1,128], index: 3, kind: input, shape index: {}]
  %s4 = inlined_call_operand.hbm [shape: bf16[2176,128], index: 4, kind: input, shape index: {}]
  %s5 = inlined_call_operand.vmem [shape: f32[1,128], index: 5, kind: input, shape index: {}]
  %s6 = inlined_call_operand.hbm [shape: f32[32,32], index: 6, kind: input, shape index: {}]
  %s7 = inlined_call_operand.vmem [shape: f32[1,32], index: 7, kind: input, shape index: {}]
  %s8 = inlined_call_operand.hbm [shape: f32[32,32], index: 8, kind: input, shape index: {}]
  %s9 = inlined_call_operand.vmem [shape: f32[1,32], index: 9, kind: input, shape index: {}]
  %s10 = inlined_call_operand.vmem [shape: f32[1,32], index: 10, kind: input, shape index: {}]
  %s11 = inlined_call_operand.vmem [shape: f32[1,32], index: 11, kind: input, shape index: {}]
  %s12 = inlined_call_operand.hbm [shape: f32[2,16,32], index: 12, kind: output, shape index: {0}]
  %s13 = inlined_call_operand.hbm [shape: f32[2,16,16], index: 13, kind: output, shape index: {1}]
  %14 = xla_tuple %s12, %s13
  %s15 = sld [smem:[#allocation0]]
  $region113: #{tpu_custom_call.1} parent=0
    _
  %s17 = ssub.s32 1, %s15
  %s18 = scalar_select 0, %s17, %s15
  $region1: #{tpu_custom_call.1} parent=0
    #allocation2 [shape = 'u8[16384]{0}', space=vmem, size = 0x4000, scoped, tag = 'input window, operand 0']
    #allocation3 [shape = 's32[2]{0}', space=sflag, size = 0x8, scoped, tag = 'scoped memory for tpu_custom_call.1']
    #allocation4 [shape = 's32[2]{0}', space=sflag, size = 0x8, scoped, tag = 'scoped memory for tpu_custom_call.1']
    #allocation5 [shape = 'u8[16384]{0}', space=vmem, size = 0x4000, scoped, tag = 'input window, operand 1']
    #allocation6 [shape = 's32[2]{0}', space=sflag, size = 0x8, scoped, tag = 'scoped memory for tpu_custom_call.1']
    #allocation7 [shape = 'u8[65536]{0}', space=vmem, size = 0x10000, scoped, tag = 'input window, operand 2, single buffered']
    #allocation8 [shape = 'u8[557056]{0}', space=vmem, size = 0x88000, scoped, tag = 'input window, operand 4, single buffered']
    #allocation9 [shape = 's32[1]{0}', space=sflag, size = 0x4, scoped, tag = 'scoped memory for tpu_custom_call.1']
    #allocation10 [shape = 'u8[16384]{0}', space=vmem, size = 0x4000, scoped, tag = 'input window, operand 6, single buffered']
    #allocation11 [shape = 'u8[16384]{0}', space=vmem, size = 0x4000, scoped, tag = 'input window, operand 8, single buffered']
    #allocation12 [shape = 's32[1]{0}', space=sflag, size = 0x4, scoped, tag = 'scoped memory for tpu_custom_call.1']
    #allocation13 [shape = 'u8[16384]{0}', space=vmem, size = 0x4000, scoped, tag = 'output window, operand 0']
    #allocation14 [shape = 'u8[16384]{0}', space=vmem, size = 0x4000, scoped, tag = 'output window, operand 1']
    #allocation15 [shape = 's32[2]{0}', space=sflag, size = 0x8, scoped, tag = 'scoped memory for tpu_custom_call.1']
    %19 = vsyncpa [#allocation3], 0
    %s20 = scalar_lea.sflag [#allocation3], 1
    %21 = vsyncpa %s20, 0
    %22 = vsyncpa [#allocation6], 0
    %s23 = scalar_lea.sflag [#allocation6], 1
    %24 = vsyncpa %s23, 0
    %25 = vsyncpa [#allocation9], 0
    %26 = vsyncpa [#allocation12], 0
    %27 = vsyncpa [#allocation4], 0
    %s28 = scalar_lea.sflag [#allocation4], 1
    %29 = vsyncpa %s28, 0
    %30 = vsyncpa [#allocation15], 0
    %s31 = scalar_lea.sflag [#allocation15], 1
    %32 = vsyncpa %s31, 0
    loop: start=0, step=1, limit=4
    $region2: #{tpu_custom_call.1} parent=1 // loop_pre_header
      _
    $region3: #{tpu_custom_call.1} parent=1 // loop_header
      %s34 = sphi 0, %s38
      %p35 = scmp.ge.s32.totalorder %s34, 4
      %s44 = sphi 0, %s46
      %s47 = sphi 0, %s44
      %s48 = sphi 0, %s47
      %s64 = sphi 0, %s48
      %s70 = sphi 0, %s72
      %s73 = sphi 0, %s70
      %s74 = sphi 0, %s73
      %s90 = sphi 0, %s74
      %s94 = sphi 0, %s94
      %s96 = sphi 0, %s94
      %s97 = sphi 0, %s96
      %s111 = sphi 0, %s97
      %s115 = sphi 0, %s115
      %s117 = sphi 0, %s115
      %s118 = sphi 0, %s117
      %s132 = sphi 0, %s118
      %s136 = sphi 0, %s136
      %s138 = sphi 0, %s136
      %s139 = sphi 0, %s138
      %s153 = sphi 0, %s139
      %s157 = sphi 0, %s157
      %s159 = sphi 0, %s157
      %s160 = sphi 0, %s159
      %s174 = sphi 0, %s160
      %s178 = sphi 0, %s178
      %s180 = sphi 0, %s178
      %s181 = sphi 0, %s180
      %s195 = sphi 0, %s181
      %s199 = sphi 0, %s199
      %s201 = sphi 0, %s199
      %s202 = sphi 0, %s201
      %s216 = sphi 0, %s202
      %s220 = sphi 0, %s220
      %s222 = sphi 0, %s220
      %s223 = sphi 0, %s222
      %s237 = sphi 0, %s223
      %s241 = sphi 0, %s241
      %s243 = sphi 0, %s241
      %s244 = sphi 0, %s243
      %s258 = sphi 0, %s244
      %s262 = sphi 0, %s262
      %s264 = sphi 0, %s262
      %s265 = sphi 0, %s264
      %s279 = sphi 0, %s265
      %s283 = sphi 0, %s283
      %s285 = sphi 0, %s283
      %s286 = sphi 0, %s285
      %s300 = sphi 0, %s286
      %s306 = sphi 0, %s308
      %s309 = sphi 0, %s306
      %s310 = sphi 0, %s309
      %s326 = sphi 0, %s310
      %s332 = sphi 0, %s334
      %s335 = sphi 0, %s332
      %s336 = sphi 0, %s335
      %s352 = sphi 0, %s336
    $region4: #{tpu_custom_call.1} parent=1 // loop_header_branch
      %37 = sbr.rel (%p35) target = $region8
    $region5: #{tpu_custom_call.1} parent=1 // loop_body
      %s39 = ssub.s32 %s34, 1
      %s40 = ssub.s32 %s34, 2
      %s41 = sadd.s32 %s34, 1
      %s42 = ssub.s32 %s34, %s41
      %p43 = scmp.eq.s32.totalorder %s42, 0
      %s45 = sadd.s32 %s44, 1
      %s46 = scalar_select %p43, %s44, %s45
      %p49 = pneg %p43
      %p50 = scmp.eq.s32.totalorder %s34, 1
      %p51 = por %p49, %p50
      %p52 = scmp.ne.s32.totalorder %s44, %s47
      %p53 = scmp.eq.s32.totalorder %s34, 0
      %p54 = por %p52, %p53
      %p55 = scmp.ne.s32.totalorder %s44, %s47
      %p56 = scmp.eq.s32.totalorder %s39, 1
      %p57 = por %p55, %p56
      %p58 = scmp.ne.s32.totalorder %s47, %s48
      %p59 = scmp.eq.s32.totalorder %s39, 0
      %p60 = por %p58, %p59
      %p61 = scmp.ne.s32.totalorder %s47, %s48
      %p62 = scmp.eq.s32.totalorder %s40, 1
      %p63 = por %p61, %p62
      %p65 = scmp.ne.s32.totalorder %s48, %s64
      %p66 = scmp.eq.s32.totalorder %s40, 0
      %p67 = por %p65, %p66
      %s68 = ssub.s32 %s34, %s41
      %p69 = scmp.eq.s32.totalorder %s68, 0
      %s71 = sadd.s32 %s70, 1
      %s72 = scalar_select %p69, %s70, %s71
      %p75 = pneg %p69
      %p76 = scmp.eq.s32.totalorder %s34, 1
      %p77 = por %p75, %p76
      %p78 = scmp.ne.s32.totalorder %s70, %s73
      %p79 = scmp.eq.s32.totalorder %s34, 0
      %p80 = por %p78, %p79
      %p81 = scmp.ne.s32.totalorder %s70, %s73
      %p82 = scmp.eq.s32.totalorder %s39, 1
      %p83 = por %p81, %p82
      %p84 = scmp.ne.s32.totalorder %s73, %s74
      %p85 = scmp.eq.s32.totalorder %s39, 0
      %p86 = por %p84, %p85
      %p87 = scmp.ne.s32.totalorder %s73, %s74
      %p88 = scmp.eq.s32.totalorder %s40, 1
      %p89 = por %p87, %p88
      %p91 = scmp.ne.s32.totalorder %s74, %s90
      %p92 = scmp.eq.s32.totalorder %s40, 0
      %p93 = por %p91, %p92
      %s95 = sadd.s32 %s94, 1
      %p98 = scmp.eq.s32.totalorder %s34, 1
      %p99 = scmp.ne.s32.totalorder %s94, %s96
      %p100 = scmp.eq.s32.totalorder %s34, 0
      %p101 = por %p99, %p100
      %p102 = scmp.ne.s32.totalorder %s94, %s96
      %p103 = scmp.eq.s32.totalorder %s39, 1
      %p104 = por %p102, %p103
      %p105 = scmp.ne.s32.totalorder %s96, %s97
      %p106 = scmp.eq.s32.totalorder %s39, 0
      %p107 = por %p105, %p106
      %p108 = scmp.ne.s32.totalorder %s96, %s97
      %p109 = scmp.eq.s32.totalorder %s40, 1
      %p110 = por %p108, %p109
      %p112 = scmp.ne.s32.totalorder %s97, %s111
      %p113 = scmp.eq.s32.totalorder %s40, 0
      %p114 = por %p112, %p113
      %s116 = sadd.s32 %s115, 1
      %p119 = scmp.eq.s32.totalorder %s34, 1
      %p120 = scmp.ne.s32.totalorder %s115, %s117
      %p121 = scmp.eq.s32.totalorder %s34, 0
      %p122 = por %p120, %p121
      %p123 = scmp.ne.s32.totalorder %s115, %s117
      %p124 = scmp.eq.s32.totalorder %s39, 1
      %p125 = por %p123, %p124
      %p126 = scmp.ne.s32.totalorder %s117, %s118
      %p127 = scmp.eq.s32.totalorder %s39, 0
      %p128 = por %p126, %p127
      %p129 = scmp.ne.s32.totalorder %s117, %s118
      %p130 = scmp.eq.s32.totalorder %s40, 1
      %p131 = por %p129, %p130
      %p133 = scmp.ne.s32.totalorder %s118, %s132
      %p134 = scmp.eq.s32.totalorder %s40, 0
      %p135 = por %p133, %p134
      %s137 = sadd.s32 %s136, 1
      %p140 = scmp.eq.s32.totalorder %s34, 1
      %p141 = scmp.ne.s32.totalorder %s136, %s138
      %p142 = scmp.eq.s32.totalorder %s34, 0
      %p143 = por %p141, %p142
      %p144 = scmp.ne.s32.totalorder %s136, %s138
      %p145 = scmp.eq.s32.totalorder %s39, 1
      %p146 = por %p144, %p145
      %p147 = scmp.ne.s32.totalorder %s138, %s139
      %p148 = scmp.eq.s32.totalorder %s39, 0
      %p149 = por %p147, %p148
      %p150 = scmp.ne.s32.totalorder %s138, %s139
      %p151 = scmp.eq.s32.totalorder %s40, 1
      %p152 = por %p150, %p151
      %p154 = scmp.ne.s32.totalorder %s139, %s153
      %p155 = scmp.eq.s32.totalorder %s40, 0
      %p156 = por %p154, %p155
      %s158 = sadd.s32 %s157, 1
      %p161 = scmp.eq.s32.totalorder %s34, 1
      %p162 = scmp.ne.s32.totalorder %s157, %s159
      %p163 = scmp.eq.s32.totalorder %s34, 0
      %p164 = por %p162, %p163
      %p165 = scmp.ne.s32.totalorder %s157, %s159
      %p166 = scmp.eq.s32.totalorder %s39, 1
      %p167 = por %p165, %p166
      %p168 = scmp.ne.s32.totalorder %s159, %s160
      %p169 = scmp.eq.s32.totalorder %s39, 0
      %p170 = por %p168, %p169
      %p171 = scmp.ne.s32.totalorder %s159, %s160
      %p172 = scmp.eq.s32.totalorder %s40, 1
      %p173 = por %p171, %p172
      %p175 = scmp.ne.s32.totalorder %s160, %s174
      %p176 = scmp.eq.s32.totalorder %s40, 0
      %p177 = por %p175, %p176
      %s179 = sadd.s32 %s178, 1
      %p182 = scmp.eq.s32.totalorder %s34, 1
      %p183 = scmp.ne.s32.totalorder %s178, %s180
      %p184 = scmp.eq.s32.totalorder %s34, 0
      %p185 = por %p183, %p184
      %p186 = scmp.ne.s32.totalorder %s178, %s180
      %p187 = scmp.eq.s32.totalorder %s39, 1
      %p188 = por %p186, %p187
      %p189 = scmp.ne.s32.totalorder %s180, %s181
      %p190 = scmp.eq.s32.totalorder %s39, 0
      %p191 = por %p189, %p190
      %p192 = scmp.ne.s32.totalorder %s180, %s181
      %p193 = scmp.eq.s32.totalorder %s40, 1
      %p194 = por %p192, %p193
      %p196 = scmp.ne.s32.totalorder %s181, %s195
      %p197 = scmp.eq.s32.totalorder %s40, 0
      %p198 = por %p196, %p197
      %s200 = sadd.s32 %s199, 1
      %p203 = scmp.eq.s32.totalorder %s34, 1
      %p204 = scmp.ne.s32.totalorder %s199, %s201
      %p205 = scmp.eq.s32.totalorder %s34, 0
      %p206 = por %p204, %p205
      %p207 = scmp.ne.s32.totalorder %s199, %s201
      %p208 = scmp.eq.s32.totalorder %s39, 1
      %p209 = por %p207, %p208
      %p210 = scmp.ne.s32.totalorder %s201, %s202
      %p211 = scmp.eq.s32.totalorder %s39, 0
      %p212 = por %p210, %p211
      %p213 = scmp.ne.s32.totalorder %s201, %s202
      %p214 = scmp.eq.s32.totalorder %s40, 1
      %p215 = por %p213, %p214
      %p217 = scmp.ne.s32.totalorder %s202, %s216
      %p218 = scmp.eq.s32.totalorder %s40, 0
      %p219 = por %p217, %p218
      %s221 = sadd.s32 %s220, 1
      %p224 = scmp.eq.s32.totalorder %s34, 1
      %p225 = scmp.ne.s32.totalorder %s220, %s222
      %p226 = scmp.eq.s32.totalorder %s34, 0
      %p227 = por %p225, %p226
      %p228 = scmp.ne.s32.totalorder %s220, %s222
      %p229 = scmp.eq.s32.totalorder %s39, 1
      %p230 = por %p228, %p229
      %p231 = scmp.ne.s32.totalorder %s222, %s223
      %p232 = scmp.eq.s32.totalorder %s39, 0
      %p233 = por %p231, %p232
      %p234 = scmp.ne.s32.totalorder %s222, %s223
      %p235 = scmp.eq.s32.totalorder %s40, 1
      %p236 = por %p234, %p235
      %p238 = scmp.ne.s32.totalorder %s223, %s237
      %p239 = scmp.eq.s32.totalorder %s40, 0
      %p240 = por %p238, %p239
      %s242 = sadd.s32 %s241, 1
      %p245 = scmp.eq.s32.totalorder %s34, 1
      %p246 = scmp.ne.s32.totalorder %s241, %s243
      %p247 = scmp.eq.s32.totalorder %s34, 0
      %p248 = por %p246, %p247
      %p249 = scmp.ne.s32.totalorder %s241, %s243
      %p250 = scmp.eq.s32.totalorder %s39, 1
      %p251 = por %p249, %p250
      %p252 = scmp.ne.s32.totalorder %s243, %s244
      %p253 = scmp.eq.s32.totalorder %s39, 0
      %p254 = por %p252, %p253
      %p255 = scmp.ne.s32.totalorder %s243, %s244
      %p256 = scmp.eq.s32.totalorder %s40, 1
      %p257 = por %p255, %p256
      %p259 = scmp.ne.s32.totalorder %s244, %s258
      %p260 = scmp.eq.s32.totalorder %s40, 0
      %p261 = por %p259, %p260
      %s263 = sadd.s32 %s262, 1
      %p266 = scmp.eq.s32.totalorder %s34, 1
      %p267 = scmp.ne.s32.totalorder %s262, %s264
      %p268 = scmp.eq.s32.totalorder %s34, 0
      %p269 = por %p267, %p268
      %p270 = scmp.ne.s32.totalorder %s262, %s264
      %p271 = scmp.eq.s32.totalorder %s39, 1
      %p272 = por %p270, %p271
      %p273 = scmp.ne.s32.totalorder %s264, %s265
      %p274 = scmp.eq.s32.totalorder %s39, 0
      %p275 = por %p273, %p274
      %p276 = scmp.ne.s32.totalorder %s264, %s265
      %p277 = scmp.eq.s32.totalorder %s40, 1
      %p278 = por %p276, %p277
      %p280 = scmp.ne.s32.totalorder %s265, %s279
      %p281 = scmp.eq.s32.totalorder %s40, 0
      %p282 = por %p280, %p281
      %s284 = sadd.s32 %s283, 1
      %p287 = scmp.eq.s32.totalorder %s34, 1
      %p288 = scmp.ne.s32.totalorder %s283, %s285
      %p289 = scmp.eq.s32.totalorder %s34, 0
      %p290 = por %p288, %p289
      %p291 = scmp.ne.s32.totalorder %s283, %s285
      %p292 = scmp.eq.s32.totalorder %s39, 1
      %p293 = por %p291, %p292
      %p294 = scmp.ne.s32.totalorder %s285, %s286
      %p295 = scmp.eq.s32.totalorder %s39, 0
      %p296 = por %p294, %p295
      %p297 = scmp.ne.s32.totalorder %s285, %s286
      %p298 = scmp.eq.s32.totalorder %s40, 1
      %p299 = por %p297, %p298
      %p301 = scmp.ne.s32.totalorder %s286, %s300
      %p302 = scmp.eq.s32.totalorder %s40, 0
      %p303 = por %p301, %p302
      %s304 = ssub.s32 %s34, %s41
      %p305 = scmp.eq.s32.totalorder %s304, 0
      %s307 = sadd.s32 %s306, 1
      %s308 = scalar_select %p305, %s306, %s307
      %p311 = pneg %p305
      %p312 = scmp.eq.s32.totalorder %s34, 1
      %p313 = por %p311, %p312
      %p314 = scmp.ne.s32.totalorder %s306, %s309
      %p315 = scmp.eq.s32.totalorder %s34, 0
      %p316 = por %p314, %p315
      %p317 = scmp.ne.s32.totalorder %s306, %s309
      %p318 = scmp.eq.s32.totalorder %s39, 1
      %p319 = por %p317, %p318
      %p320 = scmp.ne.s32.totalorder %s309, %s310
      %p321 = scmp.eq.s32.totalorder %s39, 0
      %p322 = por %p320, %p321
      %p323 = scmp.ne.s32.totalorder %s309, %s310
      %p324 = scmp.eq.s32.totalorder %s40, 1
      %p325 = por %p323, %p324
      %p327 = scmp.ne.s32.totalorder %s310, %s326
      %p328 = scmp.eq.s32.totalorder %s40, 0
      %p329 = por %p327, %p328
      %s330 = ssub.s32 %s34, %s41
      %p331 = scmp.eq.s32.totalorder %s330, 0
      %s333 = sadd.s32 %s332, 1
      %s334 = scalar_select %p331, %s332, %s333
      %p337 = pneg %p331
      %p338 = scmp.eq.s32.totalorder %s34, 1
      %p339 = por %p337, %p338
      %p340 = scmp.ne.s32.totalorder %s332, %s335
      %p341 = scmp.eq.s32.totalorder %s34, 0
      %p342 = por %p340, %p341
      %p343 = scmp.ne.s32.totalorder %s332, %s335
      %p344 = scmp.eq.s32.totalorder %s39, 1
      %p345 = por %p343, %p344
      %p346 = scmp.ne.s32.totalorder %s335, %s336
      %p347 = scmp.eq.s32.totalorder %s39, 0
      %p348 = por %p346, %p347
      %p349 = scmp.ne.s32.totalorder %s335, %s336
      %p350 = scmp.eq.s32.totalorder %s40, 1
      %p351 = por %p349, %p350
      %p353 = scmp.ne.s32.totalorder %s336, %s352
      %p354 = scmp.eq.s32.totalorder %s40, 0
      %p355 = por %p353, %p354
      %p356 = scmp.le.s32.totalorder 1, %s34
      %p357 = scmp.lt.s32.totalorder %s34, 3
      %p358 = pnand %p356, %p357
      %p359 = pneg %p358
      // Predicated region
      $region9: #{tpu_custom_call.1} parent=5 // pred_check
        _
      $region10: #{tpu_custom_call.1} parent=5 // pred_check_branch
        %361 = sbr.rel (%p358) target = $region12
      $region11: #{tpu_custom_call.1} parent=5 // pred_region
        %s362 = ssub.s32 %s34, 1
        // Predicated region
        $region13: #{tpu_custom_call.1} parent=11 // pred_check
          %p363 = pneg %p107
        $region14: #{tpu_custom_call.1} parent=11 // pred_check_branch
          %365 = sbr.rel (%p363) target = $region16
        $region15: #{tpu_custom_call.1} parent=11 // pred_region
          %s367 = ssub.s32 2048, 2048
          %368 = vsyncadd [#allocation6], %s367
          %s369 = sshll.u32 [#allocation7], 4
          %s370 = int_to_ptr.vmem [resolvable:$true] %s369
          %375 = dma.hbm_to_vmem [thread:$0]  %s2, 2048, %s370, [#allocation6], 64, 64, 4
        $region16: #{tpu_custom_call.1} parent=11 // pred_fallthru
          _
        // Predicated region
        $region17: #{tpu_custom_call.1} parent=11 // pred_check
          %p376 = pneg %p128
        $region18: #{tpu_custom_call.1} parent=11 // pred_check_branch
          %378 = sbr.rel (%p376) target = $region20
        $region19: #{tpu_custom_call.1} parent=11 // pred_region
          _
        $region20: #{tpu_custom_call.1} parent=11 // pred_fallthru
          _
        // Predicated region
        $region21: #{tpu_custom_call.1} parent=11 // pred_check
          %p379 = pneg %p149
        $region22: #{tpu_custom_call.1} parent=11 // pred_check_branch
          %381 = sbr.rel (%p379) target = $region24
        $region23: #{tpu_custom_call.1} parent=11 // pred_region
          %s383 = ssub.s32 17408, 17408
          %384 = vsyncadd [#allocation9], %s383
          %s385 = sshll.u32 [#allocation8], 4
          %s386 = int_to_ptr.vmem [resolvable:$true] %s385
          %391 = dma.hbm_to_vmem [thread:$0]  %s4, 17408, %s386, [#allocation9], 64, 64, 4
        $region24: #{tpu_custom_call.1} parent=11 // pred_fallthru
          _
        // Predicated region
        $region25: #{tpu_custom_call.1} parent=11 // pred_check
          %p392 = pneg %p170
        $region26: #{tpu_custom_call.1} parent=11 // pred_check_branch
          %394 = sbr.rel (%p392) target = $region28
        $region27: #{tpu_custom_call.1} parent=11 // pred_region
          _
        $region28: #{tpu_custom_call.1} parent=11 // pred_fallthru
          _
        // Predicated region
        $region29: #{tpu_custom_call.1} parent=11 // pred_check
          %p395 = pneg %p191
        $region30: #{tpu_custom_call.1} parent=11 // pred_check_branch
          %397 = sbr.rel (%p395) target = $region32
        $region31: #{tpu_custom_call.1} parent=11 // pred_region
          %s399 = ssub.s32 512, 512
          %400 = vsyncadd [#allocation9], %s399
          %s401 = sshll.u32 [#allocation10], 4
          %s402 = int_to_ptr.vmem [resolvable:$true] %s401
          %407 = dma.hbm_to_vmem [thread:$0]  %s6, 512, %s402, [#allocation9], 128, 128, 8
        $region32: #{tpu_custom_call.1} parent=11 // pred_fallthru
          _
        // Predicated region
        $region33: #{tpu_custom_call.1} parent=11 // pred_check
          %p408 = pneg %p212
        $region34: #{tpu_custom_call.1} parent=11 // pred_check_branch
          %410 = sbr.rel (%p408) target = $region36
        $region35: #{tpu_custom_call.1} parent=11 // pred_region
          _
        $region36: #{tpu_custom_call.1} parent=11 // pred_fallthru
          _
        // Predicated region
        $region37: #{tpu_custom_call.1} parent=11 // pred_check
          %p411 = pneg %p233
        $region38: #{tpu_custom_call.1} parent=11 // pred_check_branch
          %413 = sbr.rel (%p411) target = $region40
        $region39: #{tpu_custom_call.1} parent=11 // pred_region
          %s415 = ssub.s32 512, 512
          %416 = vsyncadd [#allocation12], %s415
          %s417 = sshll.u32 [#allocation11], 4
          %s418 = int_to_ptr.vmem [resolvable:$true] %s417
          %423 = dma.hbm_to_vmem [thread:$0]  %s8, 512, %s418, [#allocation12], 128, 128, 8
        $region40: #{tpu_custom_call.1} parent=11 // pred_fallthru
          _
        // Predicated region
        $region41: #{tpu_custom_call.1} parent=11 // pred_check
          %p424 = pneg %p254
        $region42: #{tpu_custom_call.1} parent=11 // pred_check_branch
          %426 = sbr.rel (%p424) target = $region44
        $region43: #{tpu_custom_call.1} parent=11 // pred_region
          _
        $region44: #{tpu_custom_call.1} parent=11 // pred_fallthru
          _
        // Predicated region
        $region45: #{tpu_custom_call.1} parent=11 // pred_check
          %p427 = pneg %p275
        $region46: #{tpu_custom_call.1} parent=11 // pred_check_branch
          %429 = sbr.rel (%p427) target = $region48
        $region47: #{tpu_custom_call.1} parent=11 // pred_region
          _
        $region48: #{tpu_custom_call.1} parent=11 // pred_fallthru
          _
        // Predicated region
        $region49: #{tpu_custom_call.1} parent=11 // pred_check
          %p430 = pneg %p296
        $region50: #{tpu_custom_call.1} parent=11 // pred_check_branch
          %432 = sbr.rel (%p430) target = $region52
        $region51: #{tpu_custom_call.1} parent=11 // pred_region
          _
        $region52: #{tpu_custom_call.1} parent=11 // pred_fallthru
          _
      $region12: #{tpu_custom_call.1} parent=5 // pred_fallthru
        _
      %p433 = scmp.lt.s32.totalorder %s34, 2
      // Predicated region
      $region53: #{tpu_custom_call.1} parent=5 // pred_check
        %p434 = pneg %p433
      $region54: #{tpu_custom_call.1} parent=5 // pred_check_branch
        %436 = sbr.rel (%p434) target = $region56
      $region55: #{tpu_custom_call.1} parent=5 // pred_region
        // Predicated region
        $region57: #{tpu_custom_call.1} parent=55 // pred_check
          %p437 = pneg %p54
        $region58: #{tpu_custom_call.1} parent=55 // pred_check_branch
          %439 = sbr.rel (%p437) target = $region60
        $region59: #{tpu_custom_call.1} parent=55 // pred_region
          %s440 = sand.u32 %s44, 1
          %s441 = scalar_lea.sflag [#allocation3], %s440
          %s442 = sand.u32 %s44, 1
          %s443 = smul.addr %s442, 16
          %s444 = scalar_lea.vmem [#allocation2], %s443
          %s446 = ssub.s32 256, 256
          %447 = vsyncadd %s441, %s446
          %s448 = smul.addr %s34, 4
          %s449 = smul.addr %s448, 64
          %s450 = scalar_lea.hbm %s0, %s449
          %s451 = sshll.u32 %s444, 4
          %s452 = int_to_ptr.vmem [resolvable:$true] %s451
          %457 = dma.hbm_to_vmem [thread:$0]  %s450, 256, %s452, %s441, 128, 128, 8
        $region60: #{tpu_custom_call.1} parent=55 // pred_fallthru
          _
        // Predicated region
        $region61: #{tpu_custom_call.1} parent=55 // pred_check
          %p458 = pneg %p80
        $region62: #{tpu_custom_call.1} parent=55 // pred_check_branch
          %460 = sbr.rel (%p458) target = $region64
        $region63: #{tpu_custom_call.1} parent=55 // pred_region
          %s461 = sand.u32 %s34, 1
          %s462 = scalar_lea.sflag [#allocation6], %s461
          %s463 = sand.u32 %s70, 1
          %s464 = smul.addr %s463, 16
          %s465 = scalar_lea.vmem [#allocation5], %s464
          %s467 = ssub.s32 256, 256
          %468 = vsyncadd %s462, %s467
          %s469 = smul.addr %s34, 2
          %s470 = smul.addr %s469, 128
          %s471 = scalar_lea.hbm %s1, %s470
          %s472 = sshll.u32 %s465, 4
          %s473 = int_to_ptr.vmem [resolvable:$true] %s472
          %478 = dma.hbm_to_vmem [thread:$0]  %s471, 256, %s473, %s462, 128, 128, 8
        $region64: #{tpu_custom_call.1} parent=55 // pred_fallthru
          _
      $region56: #{tpu_custom_call.1} parent=5 // pred_fallthru
        _
      %p479 = scmp.le.s32.totalorder 1, %s34
      %p480 = scmp.lt.s32.totalorder %s34, 3
      %p481 = pnand %p479, %p480
      %p482 = pneg %p481
      // Predicated region
      $region65: #{tpu_custom_call.1} parent=5 // pred_check
        _
      $region66: #{tpu_custom_call.1} parent=5 // pred_check_branch
        %484 = sbr.rel (%p481) target = $region68
      $region67: #{tpu_custom_call.1} parent=5 // pred_region
        %s485 = ssub.s32 %s34, 1
        %s486 = sand.u32 %s47, 1
        %s487 = scalar_lea.sflag [#allocation3], %s486
        %s488 = sand.u32 %s47, 1
        %s489 = smul.addr %s488, 16
        %s490 = scalar_lea.vmem [#allocation2], %s489
        // Predicated region
        $region69: #{tpu_custom_call.1} parent=67 // pred_check
          %p491 = pneg %p60
        $region70: #{tpu_custom_call.1} parent=67 // pred_check_branch
          %493 = sbr.rel (%p491) target = $region72
        $region71: #{tpu_custom_call.1} parent=67 // pred_region
          %494 = dma.done %s487, 256
        $region72: #{tpu_custom_call.1} parent=67 // pred_fallthru
          _
        %s495 = sand.u32 %s39, 1
        %s496 = scalar_lea.sflag [#allocation6], %s495
        %s497 = sand.u32 %s73, 1
        %s498 = smul.addr %s497, 16
        %s499 = scalar_lea.vmem [#allocation5], %s498
        // Predicated region
        $region73: #{tpu_custom_call.1} parent=67 // pred_check
          %p500 = pneg %p86
        $region74: #{tpu_custom_call.1} parent=67 // pred_check_branch
          %502 = sbr.rel (%p500) target = $region76
        $region75: #{tpu_custom_call.1} parent=67 // pred_region
          %503 = dma.done %s496, 256
        $region76: #{tpu_custom_call.1} parent=67 // pred_fallthru
          _
        // Predicated region
        $region77: #{tpu_custom_call.1} parent=67 // pred_check
          %p504 = pneg %p107
        $region78: #{tpu_custom_call.1} parent=67 // pred_check_branch
          %506 = sbr.rel (%p504) target = $region80
        $region79: #{tpu_custom_call.1} parent=67 // pred_region
          %507 = dma.done [#allocation6], 2048
        $region80: #{tpu_custom_call.1} parent=67 // pred_fallthru
          _
        // Predicated region
        $region81: #{tpu_custom_call.1} parent=67 // pred_check
          %p508 = pneg %p149
        $region82: #{tpu_custom_call.1} parent=67 // pred_check_branch
          %510 = sbr.rel (%p508) target = $region84
        $region83: #{tpu_custom_call.1} parent=67 // pred_region
          %511 = dma.done [#allocation9], 17408
        $region84: #{tpu_custom_call.1} parent=67 // pred_fallthru
          _
        // Predicated region
        $region85: #{tpu_custom_call.1} parent=67 // pred_check
          %p512 = pneg %p191
        $region86: #{tpu_custom_call.1} parent=67 // pred_check_branch
          %514 = sbr.rel (%p512) target = $region88
        $region87: #{tpu_custom_call.1} parent=67 // pred_region
          %515 = dma.done [#allocation9], 512
        $region88: #{tpu_custom_call.1} parent=67 // pred_fallthru
          _
        // Predicated region
        $region89: #{tpu_custom_call.1} parent=67 // pred_check
          %p516 = pneg %p233
        $region90: #{tpu_custom_call.1} parent=67 // pred_check_branch
          %518 = sbr.rel (%p516) target = $region92
        $region91: #{tpu_custom_call.1} parent=67 // pred_region
          %519 = dma.done [#allocation12], 512
        $region92: #{tpu_custom_call.1} parent=67 // pred_fallthru
          _
        %s520 = sand.u32 %s47, 1
        %s521 = scalar_lea.sflag [#allocation3], %s520
        %s522 = sand.u32 %s47, 1
        %s523 = smul.addr %s522, 16
        %s524 = scalar_lea.vmem [#allocation2], %s523
        %p525 = pneg %p60
        %p526 = pneg %p57
        %s527 = sand.u32 %s39, 1
        %s528 = scalar_lea.sflag [#allocation6], %s527
        %s529 = sand.u32 %s73, 1
        %s530 = smul.addr %s529, 16
        %s531 = scalar_lea.vmem [#allocation5], %s530
        %p532 = pneg %p86
        %p533 = pneg %p83
        %p534 = pneg %p107
        %p535 = pneg %p104
        %p536 = pneg %p128
        %p537 = pneg %p125
        %p538 = pneg %p149
        %p539 = pneg %p146
        %p540 = pneg %p170
        %p541 = pneg %p167
        %p542 = pneg %p191
        %p543 = pneg %p188
        %p544 = pneg %p212
        %p545 = pneg %p209
        %p546 = pneg %p233
        %p547 = pneg %p230
        %p548 = pneg %p254
        %p549 = pneg %p251
        %p550 = pneg %p275
        %p551 = pneg %p272
        %p552 = pneg %p296
        %p553 = pneg %p293
        %p554 = pneg %p322
        %p555 = pneg %p319
        %s556 = sand.u32 %s309, 1
        %s557 = scalar_lea.sflag [#allocation4], %s556
        %s558 = sand.u32 %s309, 1
        %s559 = smul.addr %s558, 16
        %s560 = scalar_lea.vmem [#allocation13], %s559
        %p561 = pneg %p348
        %p562 = pneg %p345
        %s563 = sand.u32 %s335, 1
        %s564 = scalar_lea.sflag [#allocation15], %s563
        %s565 = sand.u32 %s335, 1
        %s566 = smul.addr %s565, 16
        %s567 = scalar_lea.vmem [#allocation14], %s566
        %v569 = vld [vmem:[%s490] sm:$0xff]
        %v570 = vld [vmem:[%s490 + $0x8] sm:$0xff]
        %v571 = vld [vmem:[#allocation7] sm:$0xf]
        %v572 = vld [vmem:[#allocation7 + $0x4] sm:$0xf]
        %v573 = vld [vmem:[#allocation7 + $0x8] sm:$0xf]
        %v574 = vld [vmem:[#allocation7 + $0xc] sm:$0xf]
        %v575 = vld [vmem:[#allocation7 + $0x10] sm:$0xf]
        %v576 = vld [vmem:[#allocation7 + $0x14] sm:$0xf]
        %v577 = vld [vmem:[#allocation7 + $0x18] sm:$0xf]
        %v578 = vld [vmem:[#allocation7 + $0x1c] sm:$0xf]
        %v579 = vld [vmem:[#allocation7 + $0x20] sm:$0xf]
        %v580 = vld [vmem:[#allocation7 + $0x24] sm:$0xf]
        %v581 = vld [vmem:[#allocation7 + $0x28] sm:$0xf]
        %v582 = vld [vmem:[#allocation7 + $0x2c] sm:$0xf]
        %v583 = vld [vmem:[#allocation7 + $0x30] sm:$0xf]
        %v584 = vld [vmem:[#allocation7 + $0x34] sm:$0xf]
        %v585 = vld [vmem:[#allocation7 + $0x38] sm:$0xf]
        %v586 = vld [vmem:[#allocation7 + $0x3c] sm:$0xf]
        %v587 = vld [vmem:[#allocation7 + $0x40] sm:$0xf]
        %v588 = vld [vmem:[#allocation7 + $0x44] sm:$0xf]
        %v589 = vld [vmem:[#allocation7 + $0x48] sm:$0xf]
        %v590 = vld [vmem:[#allocation7 + $0x4c] sm:$0xf]
        %v591 = vld [vmem:[#allocation7 + $0x50] sm:$0xf]
        %v592 = vld [vmem:[#allocation7 + $0x54] sm:$0xf]
        %v593 = vld [vmem:[#allocation7 + $0x58] sm:$0xf]
        %v594 = vld [vmem:[#allocation7 + $0x5c] sm:$0xf]
        %v595 = vld [vmem:[#allocation7 + $0x60] sm:$0xf]
        %v596 = vld [vmem:[#allocation7 + $0x64] sm:$0xf]
        %v597 = vld [vmem:[#allocation7 + $0x68] sm:$0xf]
        %v598 = vld [vmem:[#allocation7 + $0x6c] sm:$0xf]
        %v599 = vld [vmem:[#allocation7 + $0x70] sm:$0xf]
        %v600 = vld [vmem:[#allocation7 + $0x74] sm:$0xf]
        %v601 = vld [vmem:[#allocation7 + $0x78] sm:$0xf]
        %v602 = vld [vmem:[#allocation7 + $0x7c] sm:$0xf]
        %v603 = vld [vmem:[%s3] sm:$0x1]
        %v605 = vlaneseq
        %v606 = vshrl.u32 %v605, 7
        %v607 = vsub.s32 0, %v606
        %v608 = vrot.slane %v603, %v607
        %v612 = vunpack.c.l.b16 %v569
        %v613 = vunpack.c.h.b16 %v569
        %v614 = vunpack.c.l.b16 %v570
        %v615 = vunpack.c.h.b16 %v570
        %v616 = vpack.c.b16 %v614, %v612
        %v617 = vpack.c.b16 %v615, %v613
        %v652 = vunpack.c.l.b16 %v571
        %v653 = vunpack.c.l.b16 %v572
        %v654 = vunpack.c.l.b16 %v573
        %v655 = vunpack.c.l.b16 %v574
        %v656 = vunpack.c.l.b16 %v575
        %v657 = vunpack.c.l.b16 %v576
        %v658 = vunpack.c.l.b16 %v577
        %v659 = vunpack.c.l.b16 %v578
        %v660 = vunpack.c.l.b16 %v579
        %v661 = vunpack.c.l.b16 %v580
        %v662 = vunpack.c.l.b16 %v581
        %v663 = vunpack.c.l.b16 %v582
        %v664 = vunpack.c.l.b16 %v583
        %v665 = vunpack.c.l.b16 %v584
        %v666 = vunpack.c.l.b16 %v585
        %v667 = vunpack.c.l.b16 %v586
        %v668 = vunpack.c.l.b16 %v587
        %v669 = vunpack.c.l.b16 %v588
        %v670 = vunpack.c.l.b16 %v589
        %v671 = vunpack.c.l.b16 %v590
        %v672 = vunpack.c.l.b16 %v591
        %v673 = vunpack.c.l.b16 %v592
        %v674 = vunpack.c.l.b16 %v593
        %v675 = vunpack.c.l.b16 %v594
        %v676 = vunpack.c.l.b16 %v595
        %v677 = vunpack.c.l.b16 %v596
        %v678 = vunpack.c.l.b16 %v597
        %v679 = vunpack.c.l.b16 %v598
        %v680 = vunpack.c.l.b16 %v599
        %v681 = vunpack.c.l.b16 %v600
        %v682 = vunpack.c.l.b16 %v601
        %v683 = vunpack.c.l.b16 %v602
        %v684 = vpack.c.b16 %v653, %v652
        %v685 = vpack.c.b16 %v655, %v654
        %v686 = vpack.c.b16 %v657, %v656
        %v687 = vpack.c.b16 %v659, %v658
        %v688 = vpack.c.b16 %v661, %v660
        %v689 = vpack.c.b16 %v663, %v662
        %v690 = vpack.c.b16 %v665, %v664
        %v691 = vpack.c.b16 %v667, %v666
        %v692 = vpack.c.b16 %v669, %v668
        %v693 = vpack.c.b16 %v671, %v670
        %v694 = vpack.c.b16 %v673, %v672
        %v695 = vpack.c.b16 %v675, %v674
        %v696 = vpack.c.b16 %v677, %v676
        %v697 = vpack.c.b16 %v679, %v678
        %v698 = vpack.c.b16 %v681, %v680
        %v699 = vpack.c.b16 %v683, %v682
        %716 = vmatprep.subr.bf16.mxu0 0
        %717 = vmatpush1.bf16.msra.mxu0 %v684
        %718 = vmatprep.subr.bf16.mxu0 0
        %719 = vmatpush1.bf16.msra.mxu0 %v685
        %720 = vmatprep.subr.bf16.mxu0 0
        %721 = vmatpush1.bf16.msra.mxu0 %v686
        %722 = vmatprep.subr.bf16.mxu0 0
        %723 = vmatpush1.bf16.msra.mxu0 %v687
        %724 = vmatprep.subr.bf16.mxu0 0
        %725 = vmatpush1.bf16.msra.mxu0 %v688
        %726 = vmatprep.subr.bf16.mxu0 0
        %727 = vmatpush1.bf16.msra.mxu0 %v689
        %728 = vmatprep.subr.bf16.mxu0 0
        %729 = vmatpush1.bf16.msra.mxu0 %v690
        %730 = vmatprep.subr.bf16.mxu0 0
        %731 = vmatpush1.bf16.msra.mxu0 %v691
        %732 = vmatprep.subr.bf16.mxu0 0
        %733 = vmatpush1.bf16.msra.mxu0 %v692
        %734 = vmatprep.subr.bf16.mxu0 0
        %735 = vmatpush1.bf16.msra.mxu0 %v693
        %736 = vmatprep.subr.bf16.mxu0 0
        %737 = vmatpush1.bf16.msra.mxu0 %v694
        %738 = vmatprep.subr.bf16.mxu0 0
        %739 = vmatpush1.bf16.msra.mxu0 %v695
        %740 = vmatprep.subr.bf16.mxu0 0
        %741 = vmatpush1.bf16.msra.mxu0 %v696
        %742 = vmatprep.subr.bf16.mxu0 0
        %743 = vmatpush1.bf16.msra.mxu0 %v697
        %744 = vmatprep.subr.bf16.mxu0 0
        %745 = vmatpush1.bf16.msra.mxu0 %v698
        %746 = vmatprep.subr.bf16.mxu0 0
        %747 = vmatpush1.bf16.msra.mxu0 %v699
        %748 = vmatprep.mubr.bf16.mxu0 %v617
        %749 = vmatmul.mubr.bf16.gmra.mrb[0].mxu0 %v616
        %v750 = vpop.f32.mrb[0].mxu0
        %v751 = vadd.f32 %v608, %v750
        %v752 = vpop.f32.mrb[0].mxu0
        %v753 = vpop.f32.mrb[0].mxu0
        %v754 = vadd.f32 %v608, %v753
        %v755 = vpop.f32.mrb[0].mxu0
        %756 = vdwg.mxu0
        %vm760 = vcmask 1046528
        %v761 = vrot.slane 0.0, 1
        %v762 = vrot.slane %v751, 1
        %v763 = vsel %vm760, %v761, %v762
        %v764 = vrot.slane %v754, 1
        %v765 = vsel %vm760, %v762, %v764
        %vm768 = vcmask 1045504
        %v769 = vrot.slane 0.0, 2
        %v770 = vrot.slane %v751, 2
        %v771 = vsel %vm768, %v769, %v770
        %v772 = vrot.slane %v754, 2
        %v773 = vsel %vm768, %v770, %v772
        %vm776 = vcmask 1044480
        %v777 = vrot.slane 0.0, 3
        %v778 = vrot.slane %v751, 3
        %v779 = vsel %vm776, %v777, %v778
        %v780 = vrot.slane %v754, 3
        %v781 = vsel %vm776, %v778, %v780
        %vm784 = vcmask 1043456
        %v785 = vrot.slane 0.0, 4
        %v786 = vrot.slane %v751, 4
        %v787 = vsel %vm784, %v785, %v786
        %v788 = vrot.slane %v754, 4
        %v789 = vsel %vm784, %v786, %v788
        %vm792 = vcmask 1042432
        %v793 = vrot.slane 0.0, 5
        %v794 = vrot.slane %v751, 5
        %v795 = vsel %vm792, %v793, %v794
        %v796 = vrot.slane %v754, 5
        %v797 = vsel %vm792, %v794, %v796
        %vm800 = vcmask 1041408
        %v801 = vrot.slane 0.0, 6
        %v802 = vrot.slane %v751, 6
        %v803 = vsel %vm800, %v801, %v802
        %v804 = vrot.slane %v754, 6
        %v805 = vsel %vm800, %v802, %v804
        %vm808 = vcmask 1040384
        %v809 = vrot.slane 0.0, 7
        %v810 = vrot.slane %v751, 7
        %v811 = vsel %vm808, %v809, %v810
        %v812 = vrot.slane %v754, 7
        %v813 = vsel %vm808, %v810, %v812
        %v816 = vsel %vm760, %v764, %v761
        %v818 = vsel %vm768, %v772, %v769
        %v820 = vsel %vm776, %v780, %v777
        %v822 = vsel %vm784, %v788, %v785
        %v824 = vsel %vm792, %v796, %v793
        %v826 = vsel %vm800, %v804, %v801
        %v828 = vsel %vm808, %v812, %v809
        %v830 = vpack.c.bf16 %v751, 0.0
        %v831 = vpack.c.bf16 %v765, %v763
        %v832 = vpack.c.bf16 %v773, %v771
        %v833 = vpack.c.bf16 %v781, %v779
        %v834 = vpack.c.bf16 %v789, %v787
        %v835 = vpack.c.bf16 %v797, %v795
        %v836 = vpack.c.bf16 %v805, %v803
        %v837 = vpack.c.bf16 %v813, %v811
        %v838 = vpack.c.bf16 %v754, %v751
        %v839 = vpack.c.bf16 %v816, %v765
        %v840 = vpack.c.bf16 %v818, %v773
        %v841 = vpack.c.bf16 %v820, %v781
        %v842 = vpack.c.bf16 %v822, %v789
        %v843 = vpack.c.bf16 %v824, %v797
        %v844 = vpack.c.bf16 %v826, %v805
        %v845 = vpack.c.bf16 %v828, %v813
        %v846 = vpack.c.bf16 0.0, %v754
        %v847 = vld [vmem:[#allocation8] sm:$0xf]
        %v848 = vld [vmem:[#allocation8 + $0x4] sm:$0xf]
        %v849 = vld [vmem:[#allocation8 + $0x8] sm:$0xf]
        %v850 = vld [vmem:[#allocation8 + $0xc] sm:$0xf]
        %v851 = vld [vmem:[#allocation8 + $0x10] sm:$0xf]
        %v852 = vld [vmem:[#allocation8 + $0x14] sm:$0xf]
        %v853 = vld [vmem:[#allocation8 + $0x18] sm:$0xf]
        %v854 = vld [vmem:[#allocation8 + $0x1c] sm:$0xf]
        %v855 = vld [vmem:[#allocation8 + $0x20] sm:$0xf]
        %v856 = vld [vmem:[#allocation8 + $0x24] sm:$0xf]
        %v857 = vld [vmem:[#allocation8 + $0x28] sm:$0xf]
        %v858 = vld [vmem:[#allocation8 + $0x2c] sm:$0xf]
        %v859 = vld [vmem:[#allocation8 + $0x30] sm:$0xf]
        %v860 = vld [vmem:[#allocation8 + $0x34] sm:$0xf]
        %v861 = vld [vmem:[#allocation8 + $0x38] sm:$0xf]
        %v862 = vld [vmem:[#allocation8 + $0x3c] sm:$0xf]
        %v863 = vld [vmem:[#allocation8 + $0x40] sm:$0xf]
        %v864 = vld [vmem:[#allocation8 + $0x44] sm:$0xf]
        %v865 = vld [vmem:[#allocation8 + $0x48] sm:$0xf]
        %v866 = vld [vmem:[#allocation8 + $0x4c] sm:$0xf]
        %v867 = vld [vmem:[#allocation8 + $0x50] sm:$0xf]
        %v868 = vld [vmem:[#allocation8 + $0x54] sm:$0xf]
        %v869 = vld [vmem:[#allocation8 + $0x58] sm:$0xf]
        %v870 = vld [vmem:[#allocation8 + $0x5c] sm:$0xf]
        %v871 = vld [vmem:[#allocation8 + $0x60] sm:$0xf]
        %v872 = vld [vmem:[#allocation8 + $0x64] sm:$0xf]
        %v873 = vld [vmem:[#allocation8 + $0x68] sm:$0xf]
        %v874 = vld [vmem:[#allocation8 + $0x6c] sm:$0xf]
        %v875 = vld [vmem:[#allocation8 + $0x70] sm:$0xf]
        %v876 = vld [vmem:[#allocation8 + $0x74] sm:$0xf]
        %v877 = vld [vmem:[#allocation8 + $0x78] sm:$0xf]
        %v878 = vld [vmem:[#allocation8 + $0x7c] sm:$0xf]
        %v879 = vld [vmem:[#allocation8 + $0x80] sm:$0xf]
        %v880 = vld [vmem:[#allocation8 + $0x84] sm:$0xf]
        %v881 = vld [vmem:[#allocation8 + $0x88] sm:$0xf]
        %v882 = vld [vmem:[#allocation8 + $0x8c] sm:$0xf]
        %v883 = vld [vmem:[#allocation8 + $0x90] sm:$0xf]
        %v884 = vld [vmem:[#allocation8 + $0x94] sm:$0xf]
        %v885 = vld [vmem:[#allocation8 + $0x98] sm:$0xf]
        %v886 = vld [vmem:[#allocation8 + $0x9c] sm:$0xf]
        %v887 = vld [vmem:[#allocation8 + $0xa0] sm:$0xf]
        %v888 = vld [vmem:[#allocation8 + $0xa4] sm:$0xf]
        %v889 = vld [vmem:[#allocation8 + $0xa8] sm:$0xf]
        %v890 = vld [vmem:[#allocation8 + $0xac] sm:$0xf]
        %v891 = vld [vmem:[#allocation8 + $0xb0] sm:$0xf]
        %v892 = vld [vmem:[#allocation8 + $0xb4] sm:$0xf]
        %v893 = vld [vmem:[#allocation8 + $0xb8] sm:$0xf]
        %v894 = vld [vmem:[#allocation8 + $0xbc] sm:$0xf]
        %v895 = vld [vmem:[#allocation8 + $0xc0] sm:$0xf]
        %v896 = vld [vmem:[#allocation8 + $0xc4] sm:$0xf]
        %v897 = vld [vmem:[#allocation8 + $0xc8] sm:$0xf]
        %v898 = vld [vmem:[#allocation8 + $0xcc] sm:$0xf]
        %v899 = vld [vmem:[#allocation8 + $0xd0] sm:$0xf]
        %v900 = vld [vmem:[#allocation8 + $0xd4] sm:$0xf]
        %v901 = vld [vmem:[#allocation8 + $0xd8] sm:$0xf]
        %v902 = vld [vmem:[#allocation8 + $0xdc] sm:$0xf]
        %v903 = vld [vmem:[#allocation8 + $0xe0] sm:$0xf]
        %v904 = vld [vmem:[#allocation8 + $0xe4] sm:$0xf]
        %v905 = vld [vmem:[#allocation8 + $0xe8] sm:$0xf]
        %v906 = vld [vmem:[#allocation8 + $0xec] sm:$0xf]
        %v907 = vld [vmem:[#allocation8 + $0xf0] sm:$0xf]
        %v908 = vld [vmem:[#allocation8 + $0xf4] sm:$0xf]
        %v909 = vld [vmem:[#allocation8 + $0xf8] sm:$0xf]
        %v910 = vld [vmem:[#allocation8 + $0xfc] sm:$0xf]
        %v911 = vld [vmem:[#allocation8 + $0x100] sm:$0xf]
        %v912 = vld [vmem:[#allocation8 + $0x104] sm:$0xf]
        %v913 = vld [vmem:[#allocation8 + $0x108] sm:$0xf]
        %v914 = vld [vmem:[#allocation8 + $0x10c] sm:$0xf]
        %v915 = vld [vmem:[#allocation8 + $0x110] sm:$0xf]
        %v916 = vld [vmem:[#allocation8 + $0x114] sm:$0xf]
        %v917 = vld [vmem:[#allocation8 + $0x118] sm:$0xf]
        %v918 = vld [vmem:[#allocation8 + $0x11c] sm:$0xf]
        %v919 = vld [vmem:[#allocation8 + $0x120] sm:$0xf]
        %v920 = vld [vmem:[#allocation8 + $0x124] sm:$0xf]
        %v921 = vld [vmem:[#allocation8 + $0x128] sm:$0xf]
        %v922 = vld [vmem:[#allocation8 + $0x12c] sm:$0xf]
        %v923 = vld [vmem:[#allocation8 + $0x130] sm:$0xf]
        %v924 = vld [vmem:[#allocation8 + $0x134] sm:$0xf]
        %v925 = vld [vmem:[#allocation8 + $0x138] sm:$0xf]
        %v926 = vld [vmem:[#allocation8 + $0x13c] sm:$0xf]
        %v927 = vld [vmem:[#allocation8 + $0x140] sm:$0xf]
        %v928 = vld [vmem:[#allocation8 + $0x144] sm:$0xf]
        %v929 = vld [vmem:[#allocation8 + $0x148] sm:$0xf]
        %v930 = vld [vmem:[#allocation8 + $0x14c] sm:$0xf]
        %v931 = vld [vmem:[#allocation8 + $0x150] sm:$0xf]
        %v932 = vld [vmem:[#allocation8 + $0x154] sm:$0xf]
        %v933 = vld [vmem:[#allocation8 + $0x158] sm:$0xf]
        %v934 = vld [vmem:[#allocation8 + $0x15c] sm:$0xf]
        %v935 = vld [vmem:[#allocation8 + $0x160] sm:$0xf]
        %v936 = vld [vmem:[#allocation8 + $0x164] sm:$0xf]
        %v937 = vld [vmem:[#allocation8 + $0x168] sm:$0xf]
        %v938 = vld [vmem:[#allocation8 + $0x16c] sm:$0xf]
        %v939 = vld [vmem:[#allocation8 + $0x170] sm:$0xf]
        %v940 = vld [vmem:[#allocation8 + $0x174] sm:$0xf]
        %v941 = vld [vmem:[#allocation8 + $0x178] sm:$0xf]
        %v942 = vld [vmem:[#allocation8 + $0x17c] sm:$0xf]
        %v943 = vld [vmem:[#allocation8 + $0x180] sm:$0xf]
        %v944 = vld [vmem:[#allocation8 + $0x184] sm:$0xf]
        %v945 = vld [vmem:[#allocation8 + $0x188] sm:$0xf]
        %v946 = vld [vmem:[#allocation8 + $0x18c] sm:$0xf]
        %v947 = vld [vmem:[#allocation8 + $0x190] sm:$0xf]
        %v948 = vld [vmem:[#allocation8 + $0x194] sm:$0xf]
        %v949 = vld [vmem:[#allocation8 + $0x198] sm:$0xf]
        %v950 = vld [vmem:[#allocation8 + $0x19c] sm:$0xf]
        %v951 = vld [vmem:[#allocation8 + $0x1a0] sm:$0xf]
        %v952 = vld [vmem:[#allocation8 + $0x1a4] sm:$0xf]
        %v953 = vld [vmem:[#allocation8 + $0x1a8] sm:$0xf]
        %v954 = vld [vmem:[#allocation8 + $0x1ac] sm:$0xf]
        %v955 = vld [vmem:[#allocation8 + $0x1b0] sm:$0xf]
        %v956 = vld [vmem:[#allocation8 + $0x1b4] sm:$0xf]
        %v957 = vld [vmem:[#allocation8 + $0x1b8] sm:$0xf]
        %v958 = vld [vmem:[#allocation8 + $0x1bc] sm:$0xf]
        %v959 = vld [vmem:[#allocation8 + $0x1c0] sm:$0xf]
        %v960 = vld [vmem:[#allocation8 + $0x1c4] sm:$0xf]
        %v961 = vld [vmem:[#allocation8 + $0x1c8] sm:$0xf]
        %v962 = vld [vmem:[#allocation8 + $0x1cc] sm:$0xf]
        %v963 = vld [vmem:[#allocation8 + $0x1d0] sm:$0xf]
        %v964 = vld [vmem:[#allocation8 + $0x1d4] sm:$0xf]
        %v965 = vld [vmem:[#allocation8 + $0x1d8] sm:$0xf]
        %v966 = vld [vmem:[#allocation8 + $0x1dc] sm:$0xf]
        %v967 = vld [vmem:[#allocation8 + $0x1e0] sm:$0xf]
        %v968 = vld [vmem:[#allocation8 + $0x1e4] sm:$0xf]
        %v969 = vld [vmem:[#allocation8 + $0x1e8] sm:$0xf]
        %v970 = vld [vmem:[#allocation8 + $0x1ec] sm:$0xf]
        %v971 = vld [vmem:[#allocation8 + $0x1f0] sm:$0xf]
        %v972 = vld [vmem:[#allocation8 + $0x1f4] sm:$0xf]
        %v973 = vld [vmem:[#allocation8 + $0x1f8] sm:$0xf]
        %v974 = vld [vmem:[#allocation8 + $0x1fc] sm:$0xf]
        %v975 = vld [vmem:[#allocation8 + $0x200] sm:$0xf]
        %v976 = vld [vmem:[#allocation8 + $0x204] sm:$0xf]
        %v977 = vld [vmem:[#allocation8 + $0x208] sm:$0xf]
        %v978 = vld [vmem:[#allocation8 + $0x20c] sm:$0xf]
        %v979 = vld [vmem:[#allocation8 + $0x210] sm:$0xf]
        %v980 = vld [vmem:[#allocation8 + $0x214] sm:$0xf]
        %v981 = vld [vmem:[#allocation8 + $0x218] sm:$0xf]
        %v982 = vld [vmem:[#allocation8 + $0x21c] sm:$0xf]
        %v983 = vld [vmem:[#allocation8 + $0x220] sm:$0xf]
        %v984 = vld [vmem:[#allocation8 + $0x224] sm:$0xf]
        %v985 = vld [vmem:[#allocation8 + $0x228] sm:$0xf]
        %v986 = vld [vmem:[#allocation8 + $0x22c] sm:$0xf]
        %v987 = vld [vmem:[#allocation8 + $0x230] sm:$0xf]
        %v988 = vld [vmem:[#allocation8 + $0x234] sm:$0xf]
        %v989 = vld [vmem:[#allocation8 + $0x238] sm:$0xf]
        %v990 = vld [vmem:[#allocation8 + $0x23c] sm:$0xf]
        %v991 = vld [vmem:[#allocation8 + $0x240] sm:$0xf]
        %v992 = vld [vmem:[#allocation8 + $0x244] sm:$0xf]
        %v993 = vld [vmem:[#allocation8 + $0x248] sm:$0xf]
        %v994 = vld [vmem:[#allocation8 + $0x24c] sm:$0xf]
        %v995 = vld [vmem:[#allocation8 + $0x250] sm:$0xf]
        %v996 = vld [vmem:[#allocation8 + $0x254] sm:$0xf]
        %v997 = vld [vmem:[#allocation8 + $0x258] sm:$0xf]
        %v998 = vld [vmem:[#allocation8 + $0x25c] sm:$0xf]
        %v999 = vld [vmem:[#allocation8 + $0x260] sm:$0xf]
        %v1000 = vld [vmem:[#allocation8 + $0x264] sm:$0xf]
        %v1001 = vld [vmem:[#allocation8 + $0x268] sm:$0xf]
        %v1002 = vld [vmem:[#allocation8 + $0x26c] sm:$0xf]
        %v1003 = vld [vmem:[#allocation8 + $0x270] sm:$0xf]
        %v1004 = vld [vmem:[#allocation8 + $0x274] sm:$0xf]
        %v1005 = vld [vmem:[#allocation8 + $0x278] sm:$0xf]
        %v1006 = vld [vmem:[#allocation8 + $0x27c] sm:$0xf]
        %v1007 = vld [vmem:[#allocation8 + $0x280] sm:$0xf]
        %v1008 = vld [vmem:[#allocation8 + $0x284] sm:$0xf]
        %v1009 = vld [vmem:[#allocation8 + $0x288] sm:$0xf]
        %v1010 = vld [vmem:[#allocation8 + $0x28c] sm:$0xf]
        %v1011 = vld [vmem:[#allocation8 + $0x290] sm:$0xf]
        %v1012 = vld [vmem:[#allocation8 + $0x294] sm:$0xf]
        %v1013 = vld [vmem:[#allocation8 + $0x298] sm:$0xf]
        %v1014 = vld [vmem:[#allocation8 + $0x29c] sm:$0xf]
        %v1015 = vld [vmem:[#allocation8 + $0x2a0] sm:$0xf]
        %v1016 = vld [vmem:[#allocation8 + $0x2a4] sm:$0xf]
        %v1017 = vld [vmem:[#allocation8 + $0x2a8] sm:$0xf]
        %v1018 = vld [vmem:[#allocation8 + $0x2ac] sm:$0xf]
        %v1019 = vld [vmem:[#allocation8 + $0x2b0] sm:$0xf]
        %v1020 = vld [vmem:[#allocation8 + $0x2b4] sm:$0xf]
        %v1021 = vld [vmem:[#allocation8 + $0x2b8] sm:$0xf]
        %v1022 = vld [vmem:[#allocation8 + $0x2bc] sm:$0xf]
        %v1023 = vld [vmem:[#allocation8 + $0x2c0] sm:$0xf]
        %v1024 = vld [vmem:[#allocation8 + $0x2c4] sm:$0xf]
        %v1025 = vld [vmem:[#allocation8 + $0x2c8] sm:$0xf]
        %v1026 = vld [vmem:[#allocation8 + $0x2cc] sm:$0xf]
        %v1027 = vld [vmem:[#allocation8 + $0x2d0] sm:$0xf]
        %v1028 = vld [vmem:[#allocation8 + $0x2d4] sm:$0xf]
        %v1029 = vld [vmem:[#allocation8 + $0x2d8] sm:$0xf]
        %v1030 = vld [vmem:[#allocation8 + $0x2dc] sm:$0xf]
        %v1031 = vld [vmem:[#allocation8 + $0x2e0] sm:$0xf]
        %v1032 = vld [vmem:[#allocation8 + $0x2e4] sm:$0xf]
        %v1033 = vld [vmem:[#allocation8 + $0x2e8] sm:$0xf]
        %v1034 = vld [vmem:[#allocation8 + $0x2ec] sm:$0xf]
        %v1035 = vld [vmem:[#allocation8 + $0x2f0] sm:$0xf]
        %v1036 = vld [vmem:[#allocation8 + $0x2f4] sm:$0xf]
        %v1037 = vld [vmem:[#allocation8 + $0x2f8] sm:$0xf]
        %v1038 = vld [vmem:[#allocation8 + $0x2fc] sm:$0xf]
        %v1039 = vld [vmem:[#allocation8 + $0x300] sm:$0xf]
        %v1040 = vld [vmem:[#allocation8 + $0x304] sm:$0xf]
        %v1041 = vld [vmem:[#allocation8 + $0x308] sm:$0xf]
        %v1042 = vld [vmem:[#allocation8 + $0x30c] sm:$0xf]
        %v1043 = vld [vmem:[#allocation8 + $0x310] sm:$0xf]
        %v1044 = vld [vmem:[#allocation8 + $0x314] sm:$0xf]
        %v1045 = vld [vmem:[#allocation8 + $0x318] sm:$0xf]
        %v1046 = vld [vmem:[#allocation8 + $0x31c] sm:$0xf]
        %v1047 = vld [vmem:[#allocation8 + $0x320] sm:$0xf]
        %v1048 = vld [vmem:[#allocation8 + $0x324] sm:$0xf]
        %v1049 = vld [vmem:[#allocation8 + $0x328] sm:$0xf]
        %v1050 = vld [vmem:[#allocation8 + $0x32c] sm:$0xf]
        %v1051 = vld [vmem:[#allocation8 + $0x330] sm:$0xf]
        %v1052 = vld [vmem:[#allocation8 + $0x334] sm:$0xf]
        %v1053 = vld [vmem:[#allocation8 + $0x338] sm:$0xf]
        %v1054 = vld [vmem:[#allocation8 + $0x33c] sm:$0xf]
        %v1055 = vld [vmem:[#allocation8 + $0x340] sm:$0xf]
        %v1056 = vld [vmem:[#allocation8 + $0x344] sm:$0xf]
        %v1057 = vld [vmem:[#allocation8 + $0x348] sm:$0xf]
        %v1058 = vld [vmem:[#allocation8 + $0x34c] sm:$0xf]
        %v1059 = vld [vmem:[#allocation8 + $0x350] sm:$0xf]
        %v1060 = vld [vmem:[#allocation8 + $0x354] sm:$0xf]
        %v1061 = vld [vmem:[#allocation8 + $0x358] sm:$0xf]
        %v1062 = vld [vmem:[#allocation8 + $0x35c] sm:$0xf]
        %v1063 = vld [vmem:[#allocation8 + $0x360] sm:$0xf]
        %v1064 = vld [vmem:[#allocation8 + $0x364] sm:$0xf]
        %v1065 = vld [vmem:[#allocation8 + $0x368] sm:$0xf]
        %v1066 = vld [vmem:[#allocation8 + $0x36c] sm:$0xf]
        %v1067 = vld [vmem:[#allocation8 + $0x370] sm:$0xf]
        %v1068 = vld [vmem:[#allocation8 + $0x374] sm:$0xf]
        %v1069 = vld [vmem:[#allocation8 + $0x378] sm:$0xf]
        %v1070 = vld [vmem:[#allocation8 + $0x37c] sm:$0xf]
        %v1071 = vld [vmem:[#allocation8 + $0x380] sm:$0xf]
        %v1072 = vld [vmem:[#allocation8 + $0x384] sm:$0xf]
        %v1073 = vld [vmem:[#allocation8 + $0x388] sm:$0xf]
        %v1074 = vld [vmem:[#allocation8 + $0x38c] sm:$0xf]
        %v1075 = vld [vmem:[#allocation8 + $0x390] sm:$0xf]
        %v1076 = vld [vmem:[#allocation8 + $0x394] sm:$0xf]
        %v1077 = vld [vmem:[#allocation8 + $0x398] sm:$0xf]
        %v1078 = vld [vmem:[#allocation8 + $0x39c] sm:$0xf]
        %v1079 = vld [vmem:[#allocation8 + $0x3a0] sm:$0xf]
        %v1080 = vld [vmem:[#allocation8 + $0x3a4] sm:$0xf]
        %v1081 = vld [vmem:[#allocation8 + $0x3a8] sm:$0xf]
        %v1082 = vld [vmem:[#allocation8 + $0x3ac] sm:$0xf]
        %v1083 = vld [vmem:[#allocation8 + $0x3b0] sm:$0xf]
        %v1084 = vld [vmem:[#allocation8 + $0x3b4] sm:$0xf]
        %v1085 = vld [vmem:[#allocation8 + $0x3b8] sm:$0xf]
        %v1086 = vld [vmem:[#allocation8 + $0x3bc] sm:$0xf]
        %v1087 = vld [vmem:[#allocation8 + $0x3c0] sm:$0xf]
        %v1088 = vld [vmem:[#allocation8 + $0x3c4] sm:$0xf]
        %v1089 = vld [vmem:[#allocation8 + $0x3c8] sm:$0xf]
        %v1090 = vld [vmem:[#allocation8 + $0x3cc] sm:$0xf]
        %v1091 = vld [vmem:[#allocation8 + $0x3d0] sm:$0xf]
        %v1092 = vld [vmem:[#allocation8 + $0x3d4] sm:$0xf]
        %v1093 = vld [vmem:[#allocation8 + $0x3d8] sm:$0xf]
        %v1094 = vld [vmem:[#allocation8 + $0x3dc] sm:$0xf]
        %v1095 = vld [vmem:[#allocation8 + $0x3e0] sm:$0xf]
        %v1096 = vld [vmem:[#allocation8 + $0x3e4] sm:$0xf]
        %v1097 = vld [vmem:[#allocation8 + $0x3e8] sm:$0xf]
        %v1098 = vld [vmem:[#allocation8 + $0x3ec] sm:$0xf]
        %v1099 = vld [vmem:[#allocation8 + $0x3f0] sm:$0xf]
        %v1100 = vld [vmem:[#allocation8 + $0x3f4] sm:$0xf]
        %v1101 = vld [vmem:[#allocation8 + $0x3f8] sm:$0xf]
        %v1102 = vld [vmem:[#allocation8 + $0x3fc] sm:$0xf]
        %v1103 = vld [vmem:[#allocation8 + $0x400] sm:$0xf]
        %v1104 = vld [vmem:[#allocation8 + $0x404] sm:$0xf]
        %v1105 = vld [vmem:[#allocation8 + $0x408] sm:$0xf]
        %v1106 = vld [vmem:[#allocation8 + $0x40c] sm:$0xf]
        %v1107 = vld [vmem:[#allocation8 + $0x410] sm:$0xf]
        %v1108 = vld [vmem:[#allocation8 + $0x414] sm:$0xf]
        %v1109 = vld [vmem:[#allocation8 + $0x418] sm:$0xf]
        %v1110 = vld [vmem:[#allocation8 + $0x41c] sm:$0xf]
        %v1111 = vld [vmem:[#allocation8 + $0x420] sm:$0xf]
        %v1112 = vld [vmem:[#allocation8 + $0x424] sm:$0xf]
        %v1113 = vld [vmem:[#allocation8 + $0x428] sm:$0xf]
        %v1114 = vld [vmem:[#allocation8 + $0x42c] sm:$0xf]
        %v1115 = vld [vmem:[#allocation8 + $0x430] sm:$0xf]
        %v1116 = vld [vmem:[#allocation8 + $0x434] sm:$0xf]
        %v1117 = vld [vmem:[#allocation8 + $0x438] sm:$0xf]
        %v1118 = vld [vmem:[#allocation8 + $0x43c] sm:$0xf]
        %v1119 = vld [vmem:[%s5] sm:$0x1]
        %v1121 = vlaneseq
        %v1122 = vshrl.u32 %v1121, 7
        %v1123 = vsub.s32 0, %v1122
        %v1124 = vrot.slane %v1119, %v1123
        %v1398 = vunpack.c.l.b16 %v847
        %v1399 = vunpack.c.l.b16 %v848
        %v1400 = vunpack.c.l.b16 %v849
        %v1401 = vunpack.c.l.b16 %v850
        %v1402 = vunpack.c.l.b16 %v851
        %v1403 = vunpack.c.l.b16 %v852
        %v1404 = vunpack.c.l.b16 %v853
        %v1405 = vunpack.c.l.b16 %v854
        %v1406 = vunpack.c.l.b16 %v855
        %v1407 = vunpack.c.l.b16 %v856
        %v1408 = vunpack.c.l.b16 %v857
        %v1409 = vunpack.c.l.b16 %v858
        %v1410 = vunpack.c.l.b16 %v859
        %v1411 = vunpack.c.l.b16 %v860
        %v1412 = vunpack.c.l.b16 %v861
        %v1413 = vunpack.c.l.b16 %v862
        %v1414 = vunpack.c.l.b16 %v863
        %v1415 = vunpack.c.l.b16 %v864
        %v1416 = vunpack.c.l.b16 %v865
        %v1417 = vunpack.c.l.b16 %v866
        %v1418 = vunpack.c.l.b16 %v867
        %v1419 = vunpack.c.l.b16 %v868
        %v1420 = vunpack.c.l.b16 %v869
        %v1421 = vunpack.c.l.b16 %v870
        %v1422 = vunpack.c.l.b16 %v871
        %v1423 = vunpack.c.l.b16 %v872
        %v1424 = vunpack.c.l.b16 %v873
        %v1425 = vunpack.c.l.b16 %v874
        %v1426 = vunpack.c.l.b16 %v875
        %v1427 = vunpack.c.l.b16 %v876
        %v1428 = vunpack.c.l.b16 %v877
        %v1429 = vunpack.c.l.b16 %v878
        %v1430 = vunpack.c.l.b16 %v879
        %v1431 = vunpack.c.l.b16 %v880
        %v1432 = vunpack.c.l.b16 %v881
        %v1433 = vunpack.c.l.b16 %v882
        %v1434 = vunpack.c.l.b16 %v883
        %v1435 = vunpack.c.l.b16 %v884
        %v1436 = vunpack.c.l.b16 %v885
        %v1437 = vunpack.c.l.b16 %v886
        %v1438 = vunpack.c.l.b16 %v887
        %v1439 = vunpack.c.l.b16 %v888
        %v1440 = vunpack.c.l.b16 %v889
        %v1441 = vunpack.c.l.b16 %v890
        %v1442 = vunpack.c.l.b16 %v891
        %v1443 = vunpack.c.l.b16 %v892
        %v1444 = vunpack.c.l.b16 %v893
        %v1445 = vunpack.c.l.b16 %v894
        %v1446 = vunpack.c.l.b16 %v895
        %v1447 = vunpack.c.l.b16 %v896
        %v1448 = vunpack.c.l.b16 %v897
        %v1449 = vunpack.c.l.b16 %v898
        %v1450 = vunpack.c.l.b16 %v899
        %v1451 = vunpack.c.l.b16 %v900
        %v1452 = vunpack.c.l.b16 %v901
        %v1453 = vunpack.c.l.b16 %v902
        %v1454 = vunpack.c.l.b16 %v903
        %v1455 = vunpack.c.l.b16 %v904
        %v1456 = vunpack.c.l.b16 %v905
        %v1457 = vunpack.c.l.b16 %v906
        %v1458 = vunpack.c.l.b16 %v907
        %v1459 = vunpack.c.l.b16 %v908
        %v1460 = vunpack.c.l.b16 %v909
        %v1461 = vunpack.c.l.b16 %v910
        %v1462 = vunpack.c.l.b16 %v911
        %v1463 = vunpack.c.l.b16 %v912
        %v1464 = vunpack.c.l.b16 %v913
        %v1465 = vunpack.c.l.b16 %v914
        %v1466 = vunpack.c.l.b16 %v915
        %v1467 = vunpack.c.l.b16 %v916
        %v1468 = vunpack.c.l.b16 %v917
        %v1469 = vunpack.c.l.b16 %v918
        %v1470 = vunpack.c.l.b16 %v919
        %v1471 = vunpack.c.l.b16 %v920
        %v1472 = vunpack.c.l.b16 %v921
        %v1473 = vunpack.c.l.b16 %v922
        %v1474 = vunpack.c.l.b16 %v923
        %v1475 = vunpack.c.l.b16 %v924
        %v1476 = vunpack.c.l.b16 %v925
        %v1477 = vunpack.c.l.b16 %v926
        %v1478 = vunpack.c.l.b16 %v927
        %v1479 = vunpack.c.l.b16 %v928
        %v1480 = vunpack.c.l.b16 %v929
        %v1481 = vunpack.c.l.b16 %v930
        %v1482 = vunpack.c.l.b16 %v931
        %v1483 = vunpack.c.l.b16 %v932
        %v1484 = vunpack.c.l.b16 %v933
        %v1485 = vunpack.c.l.b16 %v934
        %v1486 = vunpack.c.l.b16 %v935
        %v1487 = vunpack.c.l.b16 %v936
        %v1488 = vunpack.c.l.b16 %v937
        %v1489 = vunpack.c.l.b16 %v938
        %v1490 = vunpack.c.l.b16 %v939
        %v1491 = vunpack.c.l.b16 %v940
        %v1492 = vunpack.c.l.b16 %v941
        %v1493 = vunpack.c.l.b16 %v942
        %v1494 = vunpack.c.l.b16 %v943
        %v1495 = vunpack.c.l.b16 %v944
        %v1496 = vunpack.c.l.b16 %v945
        %v1497 = vunpack.c.l.b16 %v946
        %v1498 = vunpack.c.l.b16 %v947
        %v1499 = vunpack.c.l.b16 %v948
        %v1500 = vunpack.c.l.b16 %v949
        %v1501 = vunpack.c.l.b16 %v950
        %v1502 = vunpack.c.l.b16 %v951
        %v1503 = vunpack.c.l.b16 %v952
        %v1504 = vunpack.c.l.b16 %v953
        %v1505 = vunpack.c.l.b16 %v954
        %v1506 = vunpack.c.l.b16 %v955
        %v1507 = vunpack.c.l.b16 %v956
        %v1508 = vunpack.c.l.b16 %v957
        %v1509 = vunpack.c.l.b16 %v958
        %v1510 = vunpack.c.l.b16 %v959
        %v1511 = vunpack.c.l.b16 %v960
        %v1512 = vunpack.c.l.b16 %v961
        %v1513 = vunpack.c.l.b16 %v962
        %v1514 = vunpack.c.l.b16 %v963
        %v1515 = vunpack.c.l.b16 %v964
        %v1516 = vunpack.c.l.b16 %v965
        %v1517 = vunpack.c.l.b16 %v966
        %v1518 = vunpack.c.l.b16 %v967
        %v1519 = vunpack.c.l.b16 %v968
        %v1520 = vunpack.c.l.b16 %v969
        %v1521 = vunpack.c.l.b16 %v970
        %v1522 = vunpack.c.l.b16 %v971
        %v1523 = vunpack.c.l.b16 %v972
        %v1524 = vunpack.c.l.b16 %v973
        %v1525 = vunpack.c.l.b16 %v974
        %v1526 = vunpack.c.l.b16 %v975
        %v1527 = vunpack.c.l.b16 %v976
        %v1528 = vunpack.c.l.b16 %v977
        %v1529 = vunpack.c.l.b16 %v978
        %v1530 = vunpack.c.l.b16 %v979
        %v1531 = vunpack.c.l.b16 %v980
        %v1532 = vunpack.c.l.b16 %v981
        %v1533 = vunpack.c.l.b16 %v982
        %v1534 = vunpack.c.l.b16 %v983
        %v1535 = vunpack.c.l.b16 %v984
        %v1536 = vunpack.c.l.b16 %v985
        %v1537 = vunpack.c.l.b16 %v986
        %v1538 = vunpack.c.l.b16 %v987
        %v1539 = vunpack.c.l.b16 %v988
        %v1540 = vunpack.c.l.b16 %v989
        %v1541 = vunpack.c.l.b16 %v990
        %v1542 = vunpack.c.l.b16 %v991
        %v1543 = vunpack.c.l.b16 %v992
        %v1544 = vunpack.c.l.b16 %v993
        %v1545 = vunpack.c.l.b16 %v994
        %v1546 = vunpack.c.l.b16 %v995
        %v1547 = vunpack.c.l.b16 %v996
        %v1548 = vunpack.c.l.b16 %v997
        %v1549 = vunpack.c.l.b16 %v998
        %v1550 = vunpack.c.l.b16 %v999
        %v1551 = vunpack.c.l.b16 %v1000
        %v1552 = vunpack.c.l.b16 %v1001
        %v1553 = vunpack.c.l.b16 %v1002
        %v1554 = vunpack.c.l.b16 %v1003
        %v1555 = vunpack.c.l.b16 %v1004
        %v1556 = vunpack.c.l.b16 %v1005
        %v1557 = vunpack.c.l.b16 %v1006
        %v1558 = vunpack.c.l.b16 %v1007
        %v1559 = vunpack.c.l.b16 %v1008
        %v1560 = vunpack.c.l.b16 %v1009
        %v1561 = vunpack.c.l.b16 %v1010
        %v1562 = vunpack.c.l.b16 %v1011
        %v1563 = vunpack.c.l.b16 %v1012
        %v1564 = vunpack.c.l.b16 %v1013
        %v1565 = vunpack.c.l.b16 %v1014
        %v1566 = vunpack.c.l.b16 %v1015
        %v1567 = vunpack.c.l.b16 %v1016
        %v1568 = vunpack.c.l.b16 %v1017
        %v1569 = vunpack.c.l.b16 %v1018
        %v1570 = vunpack.c.l.b16 %v1019
        %v1571 = vunpack.c.l.b16 %v1020
        %v1572 = vunpack.c.l.b16 %v1021
        %v1573 = vunpack.c.l.b16 %v1022
        %v1574 = vunpack.c.l.b16 %v1023
        %v1575 = vunpack.c.l.b16 %v1024
        %v1576 = vunpack.c.l.b16 %v1025
        %v1577 = vunpack.c.l.b16 %v1026
        %v1578 = vunpack.c.l.b16 %v1027
        %v1579 = vunpack.c.l.b16 %v1028
        %v1580 = vunpack.c.l.b16 %v1029
        %v1581 = vunpack.c.l.b16 %v1030
        %v1582 = vunpack.c.l.b16 %v1031
        %v1583 = vunpack.c.l.b16 %v1032
        %v1584 = vunpack.c.l.b16 %v1033
        %v1585 = vunpack.c.l.b16 %v1034
        %v1586 = vunpack.c.l.b16 %v1035
        %v1587 = vunpack.c.l.b16 %v1036
        %v1588 = vunpack.c.l.b16 %v1037
        %v1589 = vunpack.c.l.b16 %v1038
        %v1590 = vunpack.c.l.b16 %v1039
        %v1591 = vunpack.c.l.b16 %v1040
        %v1592 = vunpack.c.l.b16 %v1041
        %v1593 = vunpack.c.l.b16 %v1042
        %v1594 = vunpack.c.l.b16 %v1043
        %v1595 = vunpack.c.l.b16 %v1044
        %v1596 = vunpack.c.l.b16 %v1045
        %v1597 = vunpack.c.l.b16 %v1046
        %v1598 = vunpack.c.l.b16 %v1047
        %v1599 = vunpack.c.l.b16 %v1048
        %v1600 = vunpack.c.l.b16 %v1049
        %v1601 = vunpack.c.l.b16 %v1050
        %v1602 = vunpack.c.l.b16 %v1051
        %v1603 = vunpack.c.l.b16 %v1052
        %v1604 = vunpack.c.l.b16 %v1053
        %v1605 = vunpack.c.l.b16 %v1054
        %v1606 = vunpack.c.l.b16 %v1055
        %v1607 = vunpack.c.l.b16 %v1056
        %v1608 = vunpack.c.l.b16 %v1057
        %v1609 = vunpack.c.l.b16 %v1058
        %v1610 = vunpack.c.l.b16 %v1059
        %v1611 = vunpack.c.l.b16 %v1060
        %v1612 = vunpack.c.l.b16 %v1061
        %v1613 = vunpack.c.l.b16 %v1062
        %v1614 = vunpack.c.l.b16 %v1063
        %v1615 = vunpack.c.l.b16 %v1064
        %v1616 = vunpack.c.l.b16 %v1065
        %v1617 = vunpack.c.l.b16 %v1066
        %v1618 = vunpack.c.l.b16 %v1067
        %v1619 = vunpack.c.l.b16 %v1068
        %v1620 = vunpack.c.l.b16 %v1069
        %v1621 = vunpack.c.l.b16 %v1070
        %v1622 = vunpack.c.l.b16 %v1071
        %v1623 = vunpack.c.l.b16 %v1072
        %v1624 = vunpack.c.l.b16 %v1073
        %v1625 = vunpack.c.l.b16 %v1074
        %v1626 = vunpack.c.l.b16 %v1075
        %v1627 = vunpack.c.l.b16 %v1076
        %v1628 = vunpack.c.l.b16 %v1077
        %v1629 = vunpack.c.l.b16 %v1078
        %v1630 = vunpack.c.l.b16 %v1079
        %v1631 = vunpack.c.l.b16 %v1080
        %v1632 = vunpack.c.l.b16 %v1081
        %v1633 = vunpack.c.l.b16 %v1082
        %v1634 = vunpack.c.l.b16 %v1083
        %v1635 = vunpack.c.l.b16 %v1084
        %v1636 = vunpack.c.l.b16 %v1085
        %v1637 = vunpack.c.l.b16 %v1086
        %v1638 = vunpack.c.l.b16 %v1087
        %v1639 = vunpack.c.l.b16 %v1088
        %v1640 = vunpack.c.l.b16 %v1089
        %v1641 = vunpack.c.l.b16 %v1090
        %v1642 = vunpack.c.l.b16 %v1091
        %v1643 = vunpack.c.l.b16 %v1092
        %v1644 = vunpack.c.l.b16 %v1093
        %v1645 = vunpack.c.l.b16 %v1094
        %v1646 = vunpack.c.l.b16 %v1095
        %v1647 = vunpack.c.l.b16 %v1096
        %v1648 = vunpack.c.l.b16 %v1097
        %v1649 = vunpack.c.l.b16 %v1098
        %v1650 = vunpack.c.l.b16 %v1099
        %v1651 = vunpack.c.l.b16 %v1100
        %v1652 = vunpack.c.l.b16 %v1101
        %v1653 = vunpack.c.l.b16 %v1102
        %v1654 = vunpack.c.l.b16 %v1103
        %v1655 = vunpack.c.l.b16 %v1104
        %v1656 = vunpack.c.l.b16 %v1105
        %v1657 = vunpack.c.l.b16 %v1106
        %v1658 = vunpack.c.l.b16 %v1107
        %v1659 = vunpack.c.l.b16 %v1108
        %v1660 = vunpack.c.l.b16 %v1109
        %v1661 = vunpack.c.l.b16 %v1110
        %v1662 = vunpack.c.l.b16 %v1111
        %v1663 = vunpack.c.l.b16 %v1112
        %v1664 = vunpack.c.l.b16 %v1113
        %v1665 = vunpack.c.l.b16 %v1114
        %v1666 = vunpack.c.l.b16 %v1115
        %v1667 = vunpack.c.l.b16 %v1116
        %v1668 = vunpack.c.l.b16 %v1117
        %v1669 = vunpack.c.l.b16 %v1118
        %v1670 = vpack.c.b16 %v1399, %v1398
        %v1671 = vpack.c.b16 %v1401, %v1400
        %v1672 = vpack.c.b16 %v1403, %v1402
        %v1673 = vpack.c.b16 %v1405, %v1404
        %v1674 = vpack.c.b16 %v1407, %v1406
        %v1675 = vpack.c.b16 %v1409, %v1408
        %v1676 = vpack.c.b16 %v1411, %v1410
        %v1677 = vpack.c.b16 %v1413, %v1412
        %v1678 = vpack.c.b16 %v1415, %v1414
        %v1679 = vpack.c.b16 %v1417, %v1416
        %v1680 = vpack.c.b16 %v1419, %v1418
        %v1681 = vpack.c.b16 %v1421, %v1420
        %v1682 = vpack.c.b16 %v1423, %v1422
        %v1683 = vpack.c.b16 %v1425, %v1424
        %v1684 = vpack.c.b16 %v1427, %v1426
        %v1685 = vpack.c.b16 %v1429, %v1428
        %v1686 = vpack.c.b16 %v1431, %v1430
        %v1687 = vpack.c.b16 %v1433, %v1432
        %v1688 = vpack.c.b16 %v1435, %v1434
        %v1689 = vpack.c.b16 %v1437, %v1436
        %v1690 = vpack.c.b16 %v1439, %v1438
        %v1691 = vpack.c.b16 %v1441, %v1440
        %v1692 = vpack.c.b16 %v1443, %v1442
        %v1693 = vpack.c.b16 %v1445, %v1444
        %v1694 = vpack.c.b16 %v1447, %v1446
        %v1695 = vpack.c.b16 %v1449, %v1448
        %v1696 = vpack.c.b16 %v1451, %v1450
        %v1697 = vpack.c.b16 %v1453, %v1452
        %v1698 = vpack.c.b16 %v1455, %v1454
        %v1699 = vpack.c.b16 %v1457, %v1456
        %v1700 = vpack.c.b16 %v1459, %v1458
        %v1701 = vpack.c.b16 %v1461, %v1460
        %v1702 = vpack.c.b16 %v1463, %v1462
        %v1703 = vpack.c.b16 %v1465, %v1464
        %v1704 = vpack.c.b16 %v1467, %v1466
        %v1705 = vpack.c.b16 %v1469, %v1468
        %v1706 = vpack.c.b16 %v1471, %v1470
        %v1707 = vpack.c.b16 %v1473, %v1472
        %v1708 = vpack.c.b16 %v1475, %v1474
        %v1709 = vpack.c.b16 %v1477, %v1476
        %v1710 = vpack.c.b16 %v1479, %v1478
        %v1711 = vpack.c.b16 %v1481, %v1480
        %v1712 = vpack.c.b16 %v1483, %v1482
        %v1713 = vpack.c.b16 %v1485, %v1484
        %v1714 = vpack.c.b16 %v1487, %v1486
        %v1715 = vpack.c.b16 %v1489, %v1488
        %v1716 = vpack.c.b16 %v1491, %v1490
        %v1717 = vpack.c.b16 %v1493, %v1492
        %v1718 = vpack.c.b16 %v1495, %v1494
        %v1719 = vpack.c.b16 %v1497, %v1496
        %v1720 = vpack.c.b16 %v1499, %v1498
        %v1721 = vpack.c.b16 %v1501, %v1500
        %v1722 = vpack.c.b16 %v1503, %v1502
        %v1723 = vpack.c.b16 %v1505, %v1504
        %v1724 = vpack.c.b16 %v1507, %v1506
        %v1725 = vpack.c.b16 %v1509, %v1508
        %v1726 = vpack.c.b16 %v1511, %v1510
        %v1727 = vpack.c.b16 %v1513, %v1512
        %v1728 = vpack.c.b16 %v1515, %v1514
        %v1729 = vpack.c.b16 %v1517, %v1516
        %v1730 = vpack.c.b16 %v1519, %v1518
        %v1731 = vpack.c.b16 %v1521, %v1520
        %v1732 = vpack.c.b16 %v1523, %v1522
        %v1733 = vpack.c.b16 %v1525, %v1524
        %v1734 = vpack.c.b16 %v1527, %v1526
        %v1735 = vpack.c.b16 %v1529, %v1528
        %v1736 = vpack.c.b16 %v1531, %v1530
        %v1737 = vpack.c.b16 %v1533, %v1532
        %v1738 = vpack.c.b16 %v1535, %v1534
        %v1739 = vpack.c.b16 %v1537, %v1536
        %v1740 = vpack.c.b16 %v1539, %v1538
        %v1741 = vpack.c.b16 %v1541, %v1540
        %v1742 = vpack.c.b16 %v1543, %v1542
        %v1743 = vpack.c.b16 %v1545, %v1544
        %v1744 = vpack.c.b16 %v1547, %v1546
        %v1745 = vpack.c.b16 %v1549, %v1548
        %v1746 = vpack.c.b16 %v1551, %v1550
        %v1747 = vpack.c.b16 %v1553, %v1552
        %v1748 = vpack.c.b16 %v1555, %v1554
        %v1749 = vpack.c.b16 %v1557, %v1556
        %v1750 = vpack.c.b16 %v1559, %v1558
        %v1751 = vpack.c.b16 %v1561, %v1560
        %v1752 = vpack.c.b16 %v1563, %v1562
        %v1753 = vpack.c.b16 %v1565, %v1564
        %v1754 = vpack.c.b16 %v1567, %v1566
        %v1755 = vpack.c.b16 %v1569, %v1568
        %v1756 = vpack.c.b16 %v1571, %v1570
        %v1757 = vpack.c.b16 %v1573, %v1572
        %v1758 = vpack.c.b16 %v1575, %v1574
        %v1759 = vpack.c.b16 %v1577, %v1576
        %v1760 = vpack.c.b16 %v1579, %v1578
        %v1761 = vpack.c.b16 %v1581, %v1580
        %v1762 = vpack.c.b16 %v1583, %v1582
        %v1763 = vpack.c.b16 %v1585, %v1584
        %v1764 = vpack.c.b16 %v1587, %v1586
        %v1765 = vpack.c.b16 %v1589, %v1588
        %v1766 = vpack.c.b16 %v1591, %v1590
        %v1767 = vpack.c.b16 %v1593, %v1592
        %v1768 = vpack.c.b16 %v1595, %v1594
        %v1769 = vpack.c.b16 %v1597, %v1596
        %v1770 = vpack.c.b16 %v1599, %v1598
        %v1771 = vpack.c.b16 %v1601, %v1600
        %v1772 = vpack.c.b16 %v1603, %v1602
        %v1773 = vpack.c.b16 %v1605, %v1604
        %v1774 = vpack.c.b16 %v1607, %v1606
        %v1775 = vpack.c.b16 %v1609, %v1608
        %v1776 = vpack.c.b16 %v1611, %v1610
        %v1777 = vpack.c.b16 %v1613, %v1612
        %v1778 = vpack.c.b16 %v1615, %v1614
        %v1779 = vpack.c.b16 %v1617, %v1616
        %v1780 = vpack.c.b16 %v1619, %v1618
        %v1781 = vpack.c.b16 %v1621, %v1620
        %v1782 = vpack.c.b16 %v1623, %v1622
        %v1783 = vpack.c.b16 %v1625, %v1624
        %v1784 = vpack.c.b16 %v1627, %v1626
        %v1785 = vpack.c.b16 %v1629, %v1628
        %v1786 = vpack.c.b16 %v1631, %v1630
        %v1787 = vpack.c.b16 %v1633, %v1632
        %v1788 = vpack.c.b16 %v1635, %v1634
        %v1789 = vpack.c.b16 %v1637, %v1636
        %v1790 = vpack.c.b16 %v1639, %v1638
        %v1791 = vpack.c.b16 %v1641, %v1640
        %v1792 = vpack.c.b16 %v1643, %v1642
        %v1793 = vpack.c.b16 %v1645, %v1644
        %v1794 = vpack.c.b16 %v1647, %v1646
        %v1795 = vpack.c.b16 %v1649, %v1648
        %v1796 = vpack.c.b16 %v1651, %v1650
        %v1797 = vpack.c.b16 %v1653, %v1652
        %v1798 = vpack.c.b16 %v1655, %v1654
        %v1799 = vpack.c.b16 %v1657, %v1656
        %v1800 = vpack.c.b16 %v1659, %v1658
        %v1801 = vpack.c.b16 %v1661, %v1660
        %v1802 = vpack.c.b16 %v1663, %v1662
        %v1803 = vpack.c.b16 %v1665, %v1664
        %v1804 = vpack.c.b16 %v1667, %v1666
        %v1805 = vpack.c.b16 %v1669, %v1668
        %1942 = vmatprep.subr.bf16.mxu0 0
        %1943 = vmatpush1.bf16.msra.mxu0 %v1670
        %1944 = vmatprep.subr.bf16.mxu0 0
        %1945 = vmatpush1.bf16.msra.mxu0 %v1671
        %1946 = vmatprep.subr.bf16.mxu0 0
        %1947 = vmatpush1.bf16.msra.mxu0 %v1672
        %1948 = vmatprep.subr.bf16.mxu0 0
        %1949 = vmatpush1.bf16.msra.mxu0 %v1673
        %1950 = vmatprep.subr.bf16.mxu0 0
        %1951 = vmatpush1.bf16.msra.mxu0 %v1674
        %1952 = vmatprep.subr.bf16.mxu0 0
        %1953 = vmatpush1.bf16.msra.mxu0 %v1675
        %1954 = vmatprep.subr.bf16.mxu0 0
        %1955 = vmatpush1.bf16.msra.mxu0 %v1676
        %1956 = vmatprep.subr.bf16.mxu0 0
        %1957 = vmatpush1.bf16.msra.mxu0 %v1677
        %1958 = vmatprep.subr.bf16.mxu0 0
        %1959 = vmatpush1.bf16.msra.mxu0 %v1678
        %1960 = vmatprep.subr.bf16.mxu0 0
        %1961 = vmatpush1.bf16.msra.mxu0 %v1679
        %1962 = vmatprep.subr.bf16.mxu0 0
        %1963 = vmatpush1.bf16.msra.mxu0 %v1680
        %1964 = vmatprep.subr.bf16.mxu0 0
        %1965 = vmatpush1.bf16.msra.mxu0 %v1681
        %1966 = vmatprep.subr.bf16.mxu0 0
        %1967 = vmatpush1.bf16.msra.mxu0 %v1682
        %1968 = vmatprep.subr.bf16.mxu0 0
        %1969 = vmatpush1.bf16.msra.mxu0 %v1683
        %1970 = vmatprep.subr.bf16.mxu0 0
        %1971 = vmatpush1.bf16.msra.mxu0 %v1684
        %1972 = vmatprep.subr.bf16.mxu0 0
        %1973 = vmatpush1.bf16.msra.mxu0 %v1685
        %1974 = vmatprep.mubr.bf16.mxu0 %v831
        %1975 = vmatmul.mubr.bf16.gmra.mrb[0].mxu0 %v830
        %v1976 = vpop.f32.mrb[0].mxu0
        %v1977 = vadd.f32 %v1124, %v1976
        %v1978 = vpop.f32.mrb[0].mxu0
        %v1979 = vpop.f32.mrb[0].mxu0
        %v1980 = vadd.f32 %v1124, %v1979
        %v1981 = vpop.f32.mrb[0].mxu0
        %1982 = vdwg.mxu0
        %1983 = vmatprep.subr.bf16.mxu0 0
        %1984 = vmatpush1.bf16.msra.mxu0 %v1686
        %1985 = vmatprep.subr.bf16.mxu0 0
        %1986 = vmatpush1.bf16.msra.mxu0 %v1687
        %1987 = vmatprep.subr.bf16.mxu0 0
        %1988 = vmatpush1.bf16.msra.mxu0 %v1688
        %1989 = vmatprep.subr.bf16.mxu0 0
        %1990 = vmatpush1.bf16.msra.mxu0 %v1689
        %1991 = vmatprep.subr.bf16.mxu0 0
        %1992 = vmatpush1.bf16.msra.mxu0 %v1690
        %1993 = vmatprep.subr.bf16.mxu0 0
        %1994 = vmatpush1.bf16.msra.mxu0 %v1691
        %1995 = vmatprep.subr.bf16.mxu0 0
        %1996 = vmatpush1.bf16.msra.mxu0 %v1692
        %1997 = vmatprep.subr.bf16.mxu0 0
        %1998 = vmatpush1.bf16.msra.mxu0 %v1693
        %1999 = vmatprep.subr.bf16.mxu0 0
        %2000 = vmatpush1.bf16.msra.mxu0 %v1694
        %2001 = vmatprep.subr.bf16.mxu0 0
        %2002 = vmatpush1.bf16.msra.mxu0 %v1695
        %2003 = vmatprep.subr.bf16.mxu0 0
        %2004 = vmatpush1.bf16.msra.mxu0 %v1696
        %2005 = vmatprep.subr.bf16.mxu0 0
        %2006 = vmatpush1.bf16.msra.mxu0 %v1697
        %2007 = vmatprep.subr.bf16.mxu0 0
        %2008 = vmatpush1.bf16.msra.mxu0 %v1698
        %2009 = vmatprep.subr.bf16.mxu0 0
        %2010 = vmatpush1.bf16.msra.mxu0 %v1699
        %2011 = vmatprep.subr.bf16.mxu0 0
        %2012 = vmatpush1.bf16.msra.mxu0 %v1700
        %2013 = vmatprep.subr.bf16.mxu0 0
        %2014 = vmatpush1.bf16.msra.mxu0 %v1701
        %2015 = vmatprep.mubr.bf16.mxu0 %v833
        %2016 = vmatmul.mubr.bf16.gmra.mrb[0].mxu0 %v832
        %v2017 = vpop.f32.mrb[0].mxu0
        %v2018 = vadd.f32 %v1977, %v2017
        %v2019 = vpop.f32.mrb[0].mxu0
        %v2020 = vpop.f32.mrb[0].mxu0
        %v2021 = vadd.f32 %v1980, %v2020
        %v2022 = vpop.f32.mrb[0].mxu0
        %2023 = vdwg.mxu0
        %2024 = vmatprep.subr.bf16.mxu0 0
        %2025 = vmatpush1.bf16.msra.mxu0 %v1702
        %2026 = vmatprep.subr.bf16.mxu0 0
        %2027 = vmatpush1.bf16.msra.mxu0 %v1703
        %2028 = vmatprep.subr.bf16.mxu0 0
        %2029 = vmatpush1.bf16.msra.mxu0 %v1704
        %2030 = vmatprep.subr.bf16.mxu0 0
        %2031 = vmatpush1.bf16.msra.mxu0 %v1705
        %2032 = vmatprep.subr.bf16.mxu0 0
        %2033 = vmatpush1.bf16.msra.mxu0 %v1706
        %2034 = vmatprep.subr.bf16.mxu0 0
        %2035 = vmatpush1.bf16.msra.mxu0 %v1707
        %2036 = vmatprep.subr.bf16.mxu0 0
        %2037 = vmatpush1.bf16.msra.mxu0 %v1708
        %2038 = vmatprep.subr.bf16.mxu0 0
        %2039 = vmatpush1.bf16.msra.mxu0 %v1709
        %2040 = vmatprep.subr.bf16.mxu0 0
        %2041 = vmatpush1.bf16.msra.mxu0 %v1710
        %2042 = vmatprep.subr.bf16.mxu0 0
        %2043 = vmatpush1.bf16.msra.mxu0 %v1711
        %2044 = vmatprep.subr.bf16.mxu0 0
        %2045 = vmatpush1.bf16.msra.mxu0 %v1712
        %2046 = vmatprep.subr.bf16.mxu0 0
        %2047 = vmatpush1.bf16.msra.mxu0 %v1713
        %2048 = vmatprep.subr.bf16.mxu0 0
        %2049 = vmatpush1.bf16.msra.mxu0 %v1714
        %2050 = vmatprep.subr.bf16.mxu0 0
        %2051 = vmatpush1.bf16.msra.mxu0 %v1715
        %2052 = vmatprep.subr.bf16.mxu0 0
        %2053 = vmatpush1.bf16.msra.mxu0 %v1716
        %2054 = vmatprep.subr.bf16.mxu0 0
        %2055 = vmatpush1.bf16.msra.mxu0 %v1717
        %2056 = vmatprep.mubr.bf16.mxu0 %v835
        %2057 = vmatmul.mubr.bf16.gmra.mrb[0].mxu0 %v834
        %v2058 = vpop.f32.mrb[0].mxu0
        %v2059 = vadd.f32 %v2018, %v2058
        %v2060 = vpop.f32.mrb[0].mxu0
        %v2061 = vpop.f32.mrb[0].mxu0
        %v2062 = vadd.f32 %v2021, %v2061
        %v2063 = vpop.f32.mrb[0].mxu0
        %2064 = vdwg.mxu0
        %2065 = vmatprep.subr.bf16.mxu0 0
        %2066 = vmatpush1.bf16.msra.mxu0 %v1718
        %2067 = vmatprep.subr.bf16.mxu0 0
        %2068 = vmatpush1.bf16.msra.mxu0 %v1719
        %2069 = vmatprep.subr.bf16.mxu0 0
        %2070 = vmatpush1.bf16.msra.mxu0 %v1720
        %2071 = vmatprep.subr.bf16.mxu0 0
        %2072 = vmatpush1.bf16.msra.mxu0 %v1721
        %2073 = vmatprep.subr.bf16.mxu0 0
        %2074 = vmatpush1.bf16.msra.mxu0 %v1722
        %2075 = vmatprep.subr.bf16.mxu0 0
        %2076 = vmatpush1.bf16.msra.mxu0 %v1723
        %2077 = vmatprep.subr.bf16.mxu0 0
        %2078 = vmatpush1.bf16.msra.mxu0 %v1724
        %2079 = vmatprep.subr.bf16.mxu0 0
        %2080 = vmatpush1.bf16.msra.mxu0 %v1725
        %2081 = vmatprep.subr.bf16.mxu0 0
        %2082 = vmatpush1.bf16.msra.mxu0 %v1726
        %2083 = vmatprep.subr.bf16.mxu0 0
        %2084 = vmatpush1.bf16.msra.mxu0 %v1727
        %2085 = vmatprep.subr.bf16.mxu0 0
        %2086 = vmatpush1.bf16.msra.mxu0 %v1728
        %2087 = vmatprep.subr.bf16.mxu0 0
        %2088 = vmatpush1.bf16.msra.mxu0 %v1729
        %2089 = vmatprep.subr.bf16.mxu0 0
        %2090 = vmatpush1.bf16.msra.mxu0 %v1730
        %2091 = vmatprep.subr.bf16.mxu0 0
        %2092 = vmatpush1.bf16.msra.mxu0 %v1731
        %2093 = vmatprep.subr.bf16.mxu0 0
        %2094 = vmatpush1.bf16.msra.mxu0 %v1732
        %2095 = vmatprep.subr.bf16.mxu0 0
        %2096 = vmatpush1.bf16.msra.mxu0 %v1733
        %2097 = vmatprep.mubr.bf16.mxu0 %v837
        %2098 = vmatmul.mubr.bf16.gmra.mrb[0].mxu0 %v836
        %v2099 = vpop.f32.mrb[0].mxu0
        %v2100 = vadd.f32 %v2059, %v2099
        %v2101 = vpop.f32.mrb[0].mxu0
        %v2102 = vpop.f32.mrb[0].mxu0
        %v2103 = vadd.f32 %v2062, %v2102
        %v2104 = vpop.f32.mrb[0].mxu0
        %2105 = vdwg.mxu0
        %2106 = vmatprep.subr.bf16.mxu0 0
        %2107 = vmatpush1.bf16.msra.mxu0 %v1734
        %2108 = vmatprep.subr.bf16.mxu0 0
        %2109 = vmatpush1.bf16.msra.mxu0 %v1735
        %2110 = vmatprep.subr.bf16.mxu0 0
        %2111 = vmatpush1.bf16.msra.mxu0 %v1736
        %2112 = vmatprep.subr.bf16.mxu0 0
        %2113 = vmatpush1.bf16.msra.mxu0 %v1737
        %2114 = vmatprep.subr.bf16.mxu0 0
        %2115 = vmatpush1.bf16.msra.mxu0 %v1738
        %2116 = vmatprep.subr.bf16.mxu0 0
        %2117 = vmatpush1.bf16.msra.mxu0 %v1739
        %2118 = vmatprep.subr.bf16.mxu0 0
        %2119 = vmatpush1.bf16.msra.mxu0 %v1740
        %2120 = vmatprep.subr.bf16.mxu0 0
        %2121 = vmatpush1.bf16.msra.mxu0 %v1741
        %2122 = vmatprep.subr.bf16.mxu0 0
        %2123 = vmatpush1.bf16.msra.mxu0 %v1742
        %2124 = vmatprep.subr.bf16.mxu0 0
        %2125 = vmatpush1.bf16.msra.mxu0 %v1743
        %2126 = vmatprep.subr.bf16.mxu0 0
        %2127 = vmatpush1.bf16.msra.mxu0 %v1744
        %2128 = vmatprep.subr.bf16.mxu0 0
        %2129 = vmatpush1.bf16.msra.mxu0 %v1745
        %2130 = vmatprep.subr.bf16.mxu0 0
        %2131 = vmatpush1.bf16.msra.mxu0 %v1746
        %2132 = vmatprep.subr.bf16.mxu0 0
        %2133 = vmatpush1.bf16.msra.mxu0 %v1747
        %2134 = vmatprep.subr.bf16.mxu0 0
        %2135 = vmatpush1.bf16.msra.mxu0 %v1748
        %2136 = vmatprep.subr.bf16.mxu0 0
        %2137 = vmatpush1.bf16.msra.mxu0 %v1749
        %2138 = vmatprep.mubr.bf16.mxu0 %v839
        %2139 = vmatmul.mubr.bf16.gmra.mrb[0].mxu0 %v838
        %v2140 = vpop.f32.mrb[0].mxu0
        %v2141 = vadd.f32 %v2100, %v2140
        %v2142 = vpop.f32.mrb[0].mxu0
        %v2143 = vpop.f32.mrb[0].mxu0
        %v2144 = vadd.f32 %v2103, %v2143
        %v2145 = vpop.f32.mrb[0].mxu0
        %2146 = vdwg.mxu0
        %2147 = vmatprep.subr.bf16.mxu0 0
        %2148 = vmatpush1.bf16.msra.mxu0 %v1750
        %2149 = vmatprep.subr.bf16.mxu0 0
        %2150 = vmatpush1.bf16.msra.mxu0 %v1751
        %2151 = vmatprep.subr.bf16.mxu0 0
        %2152 = vmatpush1.bf16.msra.mxu0 %v1752
        %2153 = vmatprep.subr.bf16.mxu0 0
        %2154 = vmatpush1.bf16.msra.mxu0 %v1753
        %2155 = vmatprep.subr.bf16.mxu0 0
        %2156 = vmatpush1.bf16.msra.mxu0 %v1754
        %2157 = vmatprep.subr.bf16.mxu0 0
        %2158 = vmatpush1.bf16.msra.mxu0 %v1755
        %2159 = vmatprep.subr.bf16.mxu0 0
        %2160 = vmatpush1.bf16.msra.mxu0 %v1756
        %2161 = vmatprep.subr.bf16.mxu0 0
        %2162 = vmatpush1.bf16.msra.mxu0 %v1757
        %2163 = vmatprep.subr.bf16.mxu0 0
        %2164 = vmatpush1.bf16.msra.mxu0 %v1758
        %2165 = vmatprep.subr.bf16.mxu0 0
        %2166 = vmatpush1.bf16.msra.mxu0 %v1759
        %2167 = vmatprep.subr.bf16.mxu0 0
        %2168 = vmatpush1.bf16.msra.mxu0 %v1760
        %2169 = vmatprep.subr.bf16.mxu0 0
        %2170 = vmatpush1.bf16.msra.mxu0 %v1761
        %2171 = vmatprep.subr.bf16.mxu0 0
        %2172 = vmatpush1.bf16.msra.mxu0 %v1762
        %2173 = vmatprep.subr.bf16.mxu0 0
        %2174 = vmatpush1.bf16.msra.mxu0 %v1763
        %2175 = vmatprep.subr.bf16.mxu0 0
        %2176 = vmatpush1.bf16.msra.mxu0 %v1764
        %2177 = vmatprep.subr.bf16.mxu0 0
        %2178 = vmatpush1.bf16.msra.mxu0 %v1765
        %2179 = vmatprep.mubr.bf16.mxu0 %v841
        %2180 = vmatmul.mubr.bf16.gmra.mrb[0].mxu0 %v840
        %v2181 = vpop.f32.mrb[0].mxu0
        %v2182 = vadd.f32 %v2141, %v2181
        %v2183 = vpop.f32.mrb[0].mxu0
        %v2184 = vpop.f32.mrb[0].mxu0
        %v2185 = vadd.f32 %v2144, %v2184
        %v2186 = vpop.f32.mrb[0].mxu0
        %2187 = vdwg.mxu0
        %2188 = vmatprep.subr.bf16.mxu0 0
        %2189 = vmatpush1.bf16.msra.mxu0 %v1766
        %2190 = vmatprep.subr.bf16.mxu0 0
        %2191 = vmatpush1.bf16.msra.mxu0 %v1767
        %2192 = vmatprep.subr.bf16.mxu0 0
        %2193 = vmatpush1.bf16.msra.mxu0 %v1768
        %2194 = vmatprep.subr.bf16.mxu0 0
        %2195 = vmatpush1.bf16.msra.mxu0 %v1769
        %2196 = vmatprep.subr.bf16.mxu0 0
        %2197 = vmatpush1.bf16.msra.mxu0 %v1770
        %2198 = vmatprep.subr.bf16.mxu0 0
        %2199 = vmatpush1.bf16.msra.mxu0 %v1771
        %2200 = vmatprep.subr.bf16.mxu0 0
        %2201 = vmatpush1.bf16.msra.mxu0 %v1772
        %2202 = vmatprep.subr.bf16.mxu0 0
        %2203 = vmatpush1.bf16.msra.mxu0 %v1773
        %2204 = vmatprep.subr.bf16.mxu0 0
        %2205 = vmatpush1.bf16.msra.mxu0 %v1774
        %2206 = vmatprep.subr.bf16.mxu0 0
        %2207 = vmatpush1.bf16.msra.mxu0 %v1775
        %2208 = vmatprep.subr.bf16.mxu0 0
        %2209 = vmatpush1.bf16.msra.mxu0 %v1776
        %2210 = vmatprep.subr.bf16.mxu0 0
        %2211 = vmatpush1.bf16.msra.mxu0 %v1777
        %2212 = vmatprep.subr.bf16.mxu0 0
        %2213 = vmatpush1.bf16.msra.mxu0 %v1778
        %2214 = vmatprep.subr.bf16.mxu0 0
        %2215 = vmatpush1.bf16.msra.mxu0 %v1779
        %2216 = vmatprep.subr.bf16.mxu0 0
        %2217 = vmatpush1.bf16.msra.mxu0 %v1780
        %2218 = vmatprep.subr.bf16.mxu0 0
        %2219 = vmatpush1.bf16.msra.mxu0 %v1781
        %2220 = vmatprep.mubr.bf16.mxu0 %v843
        %2221 = vmatmul.mubr.bf16.gmra.mrb[0].mxu0 %v842
        %v2222 = vpop.f32.mrb[0].mxu0
        %v2223 = vadd.f32 %v2182, %v2222
        %v2224 = vpop.f32.mrb[0].mxu0
        %v2225 = vpop.f32.mrb[0].mxu0
        %v2226 = vadd.f32 %v2185, %v2225
        %v2227 = vpop.f32.mrb[0].mxu0
        %2228 = vdwg.mxu0
        %2229 = vmatprep.subr.bf16.mxu0 0
        %2230 = vmatpush1.bf16.msra.mxu0 %v1782
        %2231 = vmatprep.subr.bf16.mxu0 0
        %2232 = vmatpush1.bf16.msra.mxu0 %v1783
        %2233 = vmatprep.subr.bf16.mxu0 0
        %2234 = vmatpush1.bf16.msra.mxu0 %v1784
        %2235 = vmatprep.subr.bf16.mxu0 0
        %2236 = vmatpush1.bf16.msra.mxu0 %v1785
        %2237 = vmatprep.subr.bf16.mxu0 0
        %2238 = vmatpush1.bf16.msra.mxu0 %v1786
        %2239 = vmatprep.subr.bf16.mxu0 0
        %2240 = vmatpush1.bf16.msra.mxu0 %v1787
        %2241 = vmatprep.subr.bf16.mxu0 0
        %2242 = vmatpush1.bf16.msra.mxu0 %v1788
        %2243 = vmatprep.subr.bf16.mxu0 0
        %2244 = vmatpush1.bf16.msra.mxu0 %v1789
        %2245 = vmatprep.subr.bf16.mxu0 0
        %2246 = vmatpush1.bf16.msra.mxu0 %v1790
        %2247 = vmatprep.subr.bf16.mxu0 0
        %2248 = vmatpush1.bf16.msra.mxu0 %v1791
        %2249 = vmatprep.subr.bf16.mxu0 0
        %2250 = vmatpush1.bf16.msra.mxu0 %v1792
        %2251 = vmatprep.subr.bf16.mxu0 0
        %2252 = vmatpush1.bf16.msra.mxu0 %v1793
        %2253 = vmatprep.subr.bf16.mxu0 0
        %2254 = vmatpush1.bf16.msra.mxu0 %v1794
        %2255 = vmatprep.subr.bf16.mxu0 0
        %2256 = vmatpush1.bf16.msra.mxu0 %v1795
        %2257 = vmatprep.subr.bf16.mxu0 0
        %2258 = vmatpush1.bf16.msra.mxu0 %v1796
        %2259 = vmatprep.subr.bf16.mxu0 0
        %2260 = vmatpush1.bf16.msra.mxu0 %v1797
        %2261 = vmatprep.mubr.bf16.mxu0 %v845
        %2262 = vmatmul.mubr.bf16.gmra.mrb[0].mxu0 %v844
        %v2263 = vpop.f32.mrb[0].mxu0
        %v2264 = vadd.f32 %v2223, %v2263
        %v2265 = vpop.f32.mrb[0].mxu0
        %v2266 = vpop.f32.mrb[0].mxu0
        %v2267 = vadd.f32 %v2226, %v2266
        %v2268 = vpop.f32.mrb[0].mxu0
        %2269 = vdwg.mxu0
        %2270 = vmatprep.subr.bf16.mxu0 0
        %2271 = vmatpush1.bf16.msra.mxu0 %v1798
        %2272 = vmatprep.subr.bf16.mxu0 0
        %2273 = vmatpush1.bf16.msra.mxu0 %v1799
        %2274 = vmatprep.subr.bf16.mxu0 0
        %2275 = vmatpush1.bf16.msra.mxu0 %v1800
        %2276 = vmatprep.subr.bf16.mxu0 0
        %2277 = vmatpush1.bf16.msra.mxu0 %v1801
        %2278 = vmatprep.subr.bf16.mxu0 0
        %2279 = vmatpush1.bf16.msra.mxu0 %v1802
        %2280 = vmatprep.subr.bf16.mxu0 0
        %2281 = vmatpush1.bf16.msra.mxu0 %v1803
        %2282 = vmatprep.subr.bf16.mxu0 0
        %2283 = vmatpush1.bf16.msra.mxu0 %v1804
        %2284 = vmatprep.subr.bf16.mxu0 0
        %2285 = vmatpush1.bf16.msra.mxu0 %v1805
        %2286 = vmatprep.subr.bf16.mxu0 0
        %2287 = vmatpush1.bf16.msra.mxu0 0
        %2288 = vmatprep.subr.bf16.mxu0 0
        %2289 = vmatpush1.bf16.msra.mxu0 0
        %2290 = vmatprep.subr.bf16.mxu0 0
        %2291 = vmatpush1.bf16.msra.mxu0 0
        %2292 = vmatprep.subr.bf16.mxu0 0
        %2293 = vmatpush1.bf16.msra.mxu0 0
        %2294 = vmatprep.subr.bf16.mxu0 0
        %2295 = vmatpush1.bf16.msra.mxu0 0
        %2296 = vmatprep.subr.bf16.mxu0 0
        %2297 = vmatpush1.bf16.msra.mxu0 0
        %2298 = vmatprep.subr.bf16.mxu0 0
        %2299 = vmatpush1.bf16.msra.mxu0 0
        %2300 = vmatprep.subr.bf16.mxu0 0
        %2301 = vmatpush1.bf16.msra.mxu0 0
        %2302 = vmatprep.mubr.bf16.mxu0 0
        %2303 = vmatmul.mubr.bf16.gmra.mrb[0].mxu0 %v846
        %v2304 = vpop.f32.mrb[0].mxu0
        %v2305 = vadd.f32 %v2264, %v2304
        %v2306 = vpop.f32.mrb[0].mxu0
        %v2307 = vpop.f32.mrb[0].mxu0
        %v2308 = vadd.f32 %v2267, %v2307
        %v2309 = vpop.f32.mrb[0].mxu0
        %2310 = vdwg.mxu0
        %vm2311 = vcmask 130048
        %2312 = vst.msk [vmem:[%s567] sm:$0xff] %vm2311, %v2305
        %2313 = vst.msk [vmem:[%s567 + $0x8] sm:$0xff] %vm2311, %v2308
        %v2314 = vld [vmem:[%s499] sm:$0xff]
        %v2315 = vld [vmem:[%s499 + $0x8] sm:$0xff]
        %v2316 = vld [vmem:[#allocation10] sm:$0xff]
        %v2317 = vld [vmem:[#allocation10 + $0x8] sm:$0xff]
        %v2318 = vld [vmem:[#allocation10 + $0x10] sm:$0xff]
        %v2319 = vld [vmem:[#allocation10 + $0x18] sm:$0xff]
        %v2320 = vld [vmem:[%s7] sm:$0x1]
        %v2322 = vlaneseq
        %v2323 = vshrl.u32 %v2322, 7
        %v2324 = vsub.s32 0, %v2323
        %v2325 = vrot.slane %v2320, %v2324
        %vm2327 = vcmask 261120
        %v2329 = vsel %vm2327, %v2314, 0
        %v2332 = vsel %vm2327, %v2315, 0
        %2334 = vmatprep.subr.mxu0 0.0
        %2335 = vmatpush1.msra.mxu0 %v2316
        %2336 = vmatprep.subr.mxu0 0.0
        %2337 = vmatpush1.msra.mxu0 %v2317
        %2338 = vmatprep.subr.mxu0 0.0
        %2339 = vmatpush1.msra.mxu0 %v2318
        %2340 = vmatprep.subr.mxu0 0.0
        %2341 = vmatpush1.msra.mxu0 %v2319
        %2342 = vmatprep.subr.mxu0 0.0
        %2343 = vmatpush1.msra.mxu0 0.0
        %2344 = vmatprep.subr.mxu0 0.0
        %2345 = vmatpush1.msra.mxu0 0.0
        %2346 = vmatprep.subr.mxu0 0.0
        %2347 = vmatpush1.msra.mxu0 0.0
        %2348 = vmatprep.subr.mxu0 0.0
        %2349 = vmatpush1.msra.mxu0 0.0
        %2350 = vmatprep.subr.mxu0 0.0
        %2351 = vmatpush1.msra.mxu0 0.0
        %2352 = vmatprep.subr.mxu0 0.0
        %2353 = vmatpush1.msra.mxu0 0.0
        %2354 = vmatprep.subr.mxu0 0.0
        %2355 = vmatpush1.msra.mxu0 0.0
        %2356 = vmatprep.subr.mxu0 0.0
        %2357 = vmatpush1.msra.mxu0 0.0
        %2358 = vmatprep.subr.mxu0 0.0
        %2359 = vmatpush1.msra.mxu0 0.0
        %2360 = vmatprep.subr.mxu0 0.0
        %2361 = vmatpush1.msra.mxu0 0.0
        %2362 = vmatprep.subr.mxu0 0.0
        %2363 = vmatpush1.msra.mxu0 0.0
        %2364 = vmatprep.subr.mxu0 0.0
        %2365 = vmatpush1.msra.mxu0 0.0
        %2366 = vmatprep.subr.mxu0 0.0
        %2367 = vmatpush1.msra.mxu0 0.0
        %2368 = vmatprep.subr.mxu0 0.0
        %2369 = vmatpush1.msra.mxu0 0.0
        %2370 = vmatprep.subr.mxu0 0.0
        %2371 = vmatpush1.msra.mxu0 0.0
        %2372 = vmatprep.subr.mxu0 0.0
        %2373 = vmatpush1.msra.mxu0 0.0
        %2374 = vmatprep.subr.mxu0 0.0
        %2375 = vmatpush1.msra.mxu0 0.0
        %2376 = vmatprep.subr.mxu0 0.0
        %2377 = vmatpush1.msra.mxu0 0.0
        %2378 = vmatprep.subr.mxu0 0.0
        %2379 = vmatpush1.msra.mxu0 0.0
        %2380 = vmatprep.subr.mxu0 0.0
        %2381 = vmatpush1.msra.mxu0 0.0
        %2382 = vmatprep.subr.mxu0 0.0
        %2383 = vmatpush1.msra.mxu0 0.0
        %2384 = vmatprep.subr.mxu0 0.0
        %2385 = vmatpush1.msra.mxu0 0.0
        %2386 = vmatprep.subr.mxu0 0.0
        %2387 = vmatpush1.msra.mxu0 0.0
        %2388 = vmatprep.subr.mxu0 0.0
        %2389 = vmatpush1.msra.mxu0 0.0
        %2390 = vmatprep.subr.mxu0 0.0
        %2391 = vmatpush1.msra.mxu0 0.0
        %2392 = vmatprep.subr.mxu0 0.0
        %2393 = vmatpush1.msra.mxu0 0.0
        %2394 = vmatprep.subr.mxu0 0.0
        %2395 = vmatpush1.msra.mxu0 0.0
        %2396 = vmatprep.subr.mxu0 0.0
        %2397 = vmatpush1.msra.mxu0 0.0
        %2398 = vmatprep.mubr.f32.mxu0 0.0
        %2399 = vmatmul.mubr.f32.gmra.mrb[0].mxu0 %v2329
        %v2400 = vpop.f32.mrb[0].mxu0
        %v2401 = vadd.f32 %v2325, %v2400
        %v2402 = vpop.f32.mrb[0].mxu0
        %2403 = vmatprep.mubr.f32.mxu0 0.0
        %2404 = vmatmul.mubr.f32.gmra.mrb[0].mxu0 %v2332
        %v2405 = vpop.f32.mrb[0].mxu0
        %v2406 = vadd.f32 %v2325, %v2405
        %v2407 = vpop.f32.mrb[0].mxu0
        %2408 = vdwg.mxu0
        %v2409 = vtanh.pop %v2401
        %v2410 = vtanh.pop %v2406
        %v2412 = vsel %vm2311, %v2305, 0
        %v2415 = vsel %vm2311, %v2308, 0
        %2417 = vmatprep.subr.mxu0 0.0
        %2418 = vmatpush1.msra.mxu0 %v2409
        %2419 = vmatprep.subr.mxu0 0.0
        %2420 = vmatpush1.msra.mxu0 %v2410
        %2421 = vmatprep.subr.mxu0 0.0
        %2422 = vmatpush1.msra.mxu0 0.0
        %2423 = vmatprep.subr.mxu0 0.0
        %2424 = vmatpush1.msra.mxu0 0.0
        %2425 = vmatprep.subr.mxu0 0.0
        %2426 = vmatpush1.msra.mxu0 0.0
        %2427 = vmatprep.subr.mxu0 0.0
        %2428 = vmatpush1.msra.mxu0 0.0
        %2429 = vmatprep.subr.mxu0 0.0
        %2430 = vmatpush1.msra.mxu0 0.0
        %2431 = vmatprep.subr.mxu0 0.0
        %2432 = vmatpush1.msra.mxu0 0.0
        %2433 = vmatprep.subr.mxu0 0.0
        %2434 = vmatpush1.msra.mxu0 0.0
        %2435 = vmatprep.subr.mxu0 0.0
        %2436 = vmatpush1.msra.mxu0 0.0
        %2437 = vmatprep.subr.mxu0 0.0
        %2438 = vmatpush1.msra.mxu0 0.0
        %2439 = vmatprep.subr.mxu0 0.0
        %2440 = vmatpush1.msra.mxu0 0.0
        %2441 = vmatprep.subr.mxu0 0.0
        %2442 = vmatpush1.msra.mxu0 0.0
        %2443 = vmatprep.subr.mxu0 0.0
        %2444 = vmatpush1.msra.mxu0 0.0
        %2445 = vmatprep.subr.mxu0 0.0
        %2446 = vmatpush1.msra.mxu0 0.0
        %2447 = vmatprep.subr.mxu0 0.0
        %2448 = vmatpush1.msra.mxu0 0.0
        %2449 = vmatprep.subr.mxu0 0.0
        %2450 = vmatpush1.msra.mxu0 0.0
        %2451 = vmatprep.subr.mxu0 0.0
        %2452 = vmatpush1.msra.mxu0 0.0
        %2453 = vmatprep.subr.mxu0 0.0
        %2454 = vmatpush1.msra.mxu0 0.0
        %2455 = vmatprep.subr.mxu0 0.0
        %2456 = vmatpush1.msra.mxu0 0.0
        %2457 = vmatprep.subr.mxu0 0.0
        %2458 = vmatpush1.msra.mxu0 0.0
        %2459 = vmatprep.subr.mxu0 0.0
        %2460 = vmatpush1.msra.mxu0 0.0
        %2461 = vmatprep.subr.mxu0 0.0
        %2462 = vmatpush1.msra.mxu0 0.0
        %2463 = vmatprep.subr.mxu0 0.0
        %2464 = vmatpush1.msra.mxu0 0.0
        %2465 = vmatprep.subr.mxu0 0.0
        %2466 = vmatpush1.msra.mxu0 0.0
        %2467 = vmatprep.subr.mxu0 0.0
        %2468 = vmatpush1.msra.mxu0 0.0
        %2469 = vmatprep.subr.mxu0 0.0
        %2470 = vmatpush1.msra.mxu0 0.0
        %2471 = vmatprep.subr.mxu0 0.0
        %2472 = vmatpush1.msra.mxu0 0.0
        %2473 = vmatprep.subr.mxu0 0.0
        %2474 = vmatpush1.msra.mxu0 0.0
        %2475 = vmatprep.subr.mxu0 0.0
        %2476 = vmatpush1.msra.mxu0 0.0
        %2477 = vmatprep.subr.mxu0 0.0
        %2478 = vmatpush1.msra.mxu0 0.0
        %2479 = vmatprep.subr.mxu0 0.0
        %2480 = vmatpush1.msra.mxu0 0.0
        %2481 = vmatprep.mubr.f32.mxu0 0.0
        %2482 = vmatmul.mubr.f32.gmra.mrb[0].mxu0 %v2412
        %v2483 = vpop.f32.mrb[0].mxu0
        %v2484 = vadd.f32 0.0, %v2483
        %v2485 = vpop.f32.mrb[0].mxu0
        %2486 = vmatprep.mubr.f32.mxu0 0.0
        %2487 = vmatmul.mubr.f32.gmra.mrb[0].mxu0 %v2415
        %v2488 = vpop.f32.mrb[0].mxu0
        %v2489 = vadd.f32 0.0, %v2488
        %v2490 = vpop.f32.mrb[0].mxu0
        %2491 = vdwg.mxu0
        %v2492 = vadd.f32 %v2314, %v2484
        %v2493 = vadd.f32 %v2315, %v2489
        %v2494 = vld [vmem:[#allocation11] sm:$0xff]
        %v2495 = vld [vmem:[#allocation11 + $0x8] sm:$0xff]
        %v2496 = vld [vmem:[#allocation11 + $0x10] sm:$0xff]
        %v2497 = vld [vmem:[#allocation11 + $0x18] sm:$0xff]
        %v2498 = vld [vmem:[%s9] sm:$0x1]
        %v2500 = vlaneseq
        %v2501 = vshrl.u32 %v2500, 7
        %v2502 = vsub.s32 0, %v2501
        %v2503 = vrot.slane %v2498, %v2502
        %v2506 = vsel %vm2327, %v2492, 0
        %v2509 = vsel %vm2327, %v2493, 0
        %2511 = vmatprep.subr.mxu0 0.0
        %2512 = vmatpush1.msra.mxu0 %v2494
        %2513 = vmatprep.subr.mxu0 0.0
        %2514 = vmatpush1.msra.mxu0 %v2495
        %2515 = vmatprep.subr.mxu0 0.0
        %2516 = vmatpush1.msra.mxu0 %v2496
        %2517 = vmatprep.subr.mxu0 0.0
        %2518 = vmatpush1.msra.mxu0 %v2497
        %2519 = vmatprep.subr.mxu0 0.0
        %2520 = vmatpush1.msra.mxu0 0.0
        %2521 = vmatprep.subr.mxu0 0.0
        %2522 = vmatpush1.msra.mxu0 0.0
        %2523 = vmatprep.subr.mxu0 0.0
        %2524 = vmatpush1.msra.mxu0 0.0
        %2525 = vmatprep.subr.mxu0 0.0
        %2526 = vmatpush1.msra.mxu0 0.0
        %2527 = vmatprep.subr.mxu0 0.0
        %2528 = vmatpush1.msra.mxu0 0.0
        %2529 = vmatprep.subr.mxu0 0.0
        %2530 = vmatpush1.msra.mxu0 0.0
        %2531 = vmatprep.subr.mxu0 0.0
        %2532 = vmatpush1.msra.mxu0 0.0
        %2533 = vmatprep.subr.mxu0 0.0
        %2534 = vmatpush1.msra.mxu0 0.0
        %2535 = vmatprep.subr.mxu0 0.0
        %2536 = vmatpush1.msra.mxu0 0.0
        %2537 = vmatprep.subr.mxu0 0.0
        %2538 = vmatpush1.msra.mxu0 0.0
        %2539 = vmatprep.subr.mxu0 0.0
        %2540 = vmatpush1.msra.mxu0 0.0
        %2541 = vmatprep.subr.mxu0 0.0
        %2542 = vmatpush1.msra.mxu0 0.0
        %2543 = vmatprep.subr.mxu0 0.0
        %2544 = vmatpush1.msra.mxu0 0.0
        %2545 = vmatprep.subr.mxu0 0.0
        %2546 = vmatpush1.msra.mxu0 0.0
        %2547 = vmatprep.subr.mxu0 0.0
        %2548 = vmatpush1.msra.mxu0 0.0
        %2549 = vmatprep.subr.mxu0 0.0
        %2550 = vmatpush1.msra.mxu0 0.0
        %2551 = vmatprep.subr.mxu0 0.0
        %2552 = vmatpush1.msra.mxu0 0.0
        %2553 = vmatprep.subr.mxu0 0.0
        %2554 = vmatpush1.msra.mxu0 0.0
        %2555 = vmatprep.subr.mxu0 0.0
        %2556 = vmatpush1.msra.mxu0 0.0
        %2557 = vmatprep.subr.mxu0 0.0
        %2558 = vmatpush1.msra.mxu0 0.0
        %2559 = vmatprep.subr.mxu0 0.0
        %2560 = vmatpush1.msra.mxu0 0.0
        %2561 = vmatprep.subr.mxu0 0.0
        %2562 = vmatpush1.msra.mxu0 0.0
        %2563 = vmatprep.subr.mxu0 0.0
        %2564 = vmatpush1.msra.mxu0 0.0
        %2565 = vmatprep.subr.mxu0 0.0
        %2566 = vmatpush1.msra.mxu0 0.0
        %2567 = vmatprep.subr.mxu0 0.0
        %2568 = vmatpush1.msra.mxu0 0.0
        %2569 = vmatprep.subr.mxu0 0.0
        %2570 = vmatpush1.msra.mxu0 0.0
        %2571 = vmatprep.subr.mxu0 0.0
        %2572 = vmatpush1.msra.mxu0 0.0
        %2573 = vmatprep.subr.mxu0 0.0
        %2574 = vmatpush1.msra.mxu0 0.0
        %2575 = vmatprep.mubr.f32.mxu0 0.0
        %2576 = vmatmul.mubr.f32.gmra.mrb[0].mxu0 %v2506
        %v2577 = vpop.f32.mrb[0].mxu0
        %v2578 = vadd.f32 %v2503, %v2577
        %v2579 = vpop.f32.mrb[0].mxu0
        %2580 = vmatprep.mubr.f32.mxu0 0.0
        %2581 = vmatmul.mubr.f32.gmra.mrb[0].mxu0 %v2509
        %v2582 = vpop.f32.mrb[0].mxu0
        %v2583 = vadd.f32 %v2503, %v2582
        %v2584 = vpop.f32.mrb[0].mxu0
        %2585 = vdwg.mxu0
        %v2586 = vtanh.pop %v2578
        %v2587 = vtanh.pop %v2583
        %v2588 = vsel %vm2327, %v2586, 0.0
        %2589 = vadd.xlane.f32.xlu0 %v2588
        %v2590 = vpop.xlane.xlu0 %2589
        %v2591 = vsel %vm2327, %v2587, 0.0
        %2592 = vadd.xlane.f32.xlu0 %v2591
        %v2593 = vpop.xlane.xlu0 %2592
        %v2594 = vrcp.pop 32.0
        %v2595 = vmul.f32 %v2590, %v2594
        %v2596 = vmul.f32 %v2593, %v2594
        %v2597 = vsub.f32 %v2586, %v2595
        %v2598 = vsub.f32 %v2587, %v2596
        %v2599 = vmul.f32 %v2597, %v2597
        %v2600 = vmul.f32 %v2598, %v2598
        %v2601 = vsel %vm2327, %v2599, 0.0
        %2602 = vadd.xlane.f32.xlu0 %v2601
        %v2603 = vpop.xlane.xlu0 %2602
        %v2604 = vsel %vm2327, %v2600, 0.0
        %2605 = vadd.xlane.f32.xlu0 %v2604
        %v2606 = vpop.xlane.xlu0 %2605
        %v2607 = vmul.f32 %v2603, %v2594
        %v2608 = vmul.f32 %v2606, %v2594
        %v2609 = vadd.f32 %v2607, 1e-05
        %v2610 = vadd.f32 %v2608, 1e-05
        %v2611 = vrsqrt.pop %v2609
        %v2612 = vrsqrt.pop %v2610
        %v2613 = vmul.f32 %v2597, %v2611
        %v2614 = vmul.f32 %v2598, %v2612
        %v2615 = vld [vmem:[%s10] sm:$0x1]
        %v2617 = vlaneseq
        %v2618 = vshrl.u32 %v2617, 7
        %v2619 = vsub.s32 0, %v2618
        %v2620 = vrot.slane %v2615, %v2619
        %v2622 = vmul.f32 %v2613, %v2620
        %v2623 = vmul.f32 %v2614, %v2620
        %v2624 = vld [vmem:[%s11] sm:$0x1]
        %v2626 = vlaneseq
        %v2627 = vshrl.u32 %v2626, 7
        %v2628 = vsub.s32 0, %v2627
        %v2629 = vrot.slane %v2624, %v2628
        %v2631 = vadd.f32 %v2622, %v2629
        %v2632 = vadd.f32 %v2623, %v2629
        %2633 = vst.msk [vmem:[%s560] sm:$0xff] %vm2327, %v2631
        %2634 = vst.msk [vmem:[%s560 + $0x8] sm:$0xff] %vm2327, %v2632
        %s2635 = sand.u32 %s309, 1
        %s2636 = scalar_lea.sflag [#allocation4], %s2635
        %s2637 = sand.u32 %s309, 1
        %s2638 = smul.addr %s2637, 16
        %s2639 = scalar_lea.vmem [#allocation13], %s2638
        %s2640 = sand.u32 %s335, 1
        %s2641 = scalar_lea.sflag [#allocation15], %s2640
        %s2642 = sand.u32 %s335, 1
        %s2643 = smul.addr %s2642, 16
        %s2644 = scalar_lea.vmem [#allocation14], %s2643
        // Predicated region
        $region93: #{tpu_custom_call.1} parent=67 // pred_check
          %p2645 = pneg %p319
        $region94: #{tpu_custom_call.1} parent=67 // pred_check_branch
          %2647 = sbr.rel (%p2645) target = $region96
        $region95: #{tpu_custom_call.1} parent=67 // pred_region
          %s2649 = ssub.s32 256, 256
          %2650 = vsyncadd %s2636, %s2649
          %s2651 = smul.addr %s39, 2
          %s2652 = smul.addr %s2651, 128
          %s2653 = scalar_lea.hbm %s12, %s2652
          %s2654 = sshll.u32 %s2639, 4
          %s2655 = int_to_ptr.vmem [resolvable:$true] %s2654
          %2660 = dma.vmem_to_hbm [thread:$0]  %s2655, 256, %s2653, %s2636, 128, 128, 8
        $region96: #{tpu_custom_call.1} parent=67 // pred_fallthru
          _
        // Predicated region
        $region97: #{tpu_custom_call.1} parent=67 // pred_check
          %p2661 = pneg %p345
        $region98: #{tpu_custom_call.1} parent=67 // pred_check_branch
          %2663 = sbr.rel (%p2661) target = $region100
        $region99: #{tpu_custom_call.1} parent=67 // pred_region
          %s2665 = ssub.s32 256, 256
          %2666 = vsyncadd %s2641, %s2665
          %s2667 = smul.addr %s39, 2
          %s2668 = smul.addr %s2667, 128
          %s2669 = scalar_lea.hbm %s13, %s2668
          %s2670 = sshll.u32 %s2644, 4
          %s2671 = int_to_ptr.vmem [resolvable:$true] %s2670
          %2676 = dma.vmem_to_hbm [thread:$0]  %s2671, 256, %s2669, %s2641, 128, 128, 8
        $region100: #{tpu_custom_call.1} parent=67 // pred_fallthru
          _
      $region68: #{tpu_custom_call.1} parent=5 // pred_fallthru
        _
      %p2677 = scmp.le.s32.totalorder 2, %s34
      // Predicated region
      $region101: #{tpu_custom_call.1} parent=5 // pred_check
        %p2678 = pneg %p2677
      $region102: #{tpu_custom_call.1} parent=5 // pred_check_branch
        %2680 = sbr.rel (%p2678) target = $region104
      $region103: #{tpu_custom_call.1} parent=5 // pred_region
        %s2681 = ssub.s32 %s34, 2
        // Predicated region
        $region105: #{tpu_custom_call.1} parent=103 // pred_check
          %p2682 = pneg %p325
        $region106: #{tpu_custom_call.1} parent=103 // pred_check_branch
          %2684 = sbr.rel (%p2682) target = $region108
        $region107: #{tpu_custom_call.1} parent=103 // pred_region
          %s2685 = sand.u32 %s310, 1
          %s2686 = scalar_lea.sflag [#allocation4], %s2685
          %s2687 = sand.u32 %s310, 1
          %s2688 = smul.addr %s2687, 16
          %s2689 = scalar_lea.vmem [#allocation13], %s2688
          %2690 = dma.done %s2686, 256
        $region108: #{tpu_custom_call.1} parent=103 // pred_fallthru
          _
        // Predicated region
        $region109: #{tpu_custom_call.1} parent=103 // pred_check
          %p2691 = pneg %p351
        $region110: #{tpu_custom_call.1} parent=103 // pred_check_branch
          %2693 = sbr.rel (%p2691) target = $region112
        $region111: #{tpu_custom_call.1} parent=103 // pred_region
          %s2694 = sand.u32 %s336, 1
          %s2695 = scalar_lea.sflag [#allocation15], %s2694
          %s2696 = sand.u32 %s336, 1
          %s2697 = smul.addr %s2696, 16
          %s2698 = scalar_lea.vmem [#allocation14], %s2697
          %2699 = dma.done %s2695, 256
        $region112: #{tpu_custom_call.1} parent=103 // pred_fallthru
          _
      $region104: #{tpu_custom_call.1} parent=5 // pred_fallthru
        _
    $region6: #{tpu_custom_call.1} parent=1 // loop_footer
      %s38 = sadd.s32 1, %s34
    $region7: #{tpu_custom_call.1} parent=1 // loop_footer_branch
      %33 = sbr.rel target = $region3
    $region8: #{tpu_custom_call.1} parent=1 // loop_exit
      _
    %2700 = vsyncpa [#allocation3], 1
    %s2701 = scalar_lea.sflag [#allocation3], 1
    %2702 = vsyncpa %s2701, 1
    %2703 = vsyncpa [#allocation6], 1
    %s2704 = scalar_lea.sflag [#allocation6], 1
    %2705 = vsyncpa %s2704, 1
    %2706 = vsyncpa [#allocation9], 1
    %2707 = vsyncpa [#allocation12], 1
    %2708 = vsyncpa [#allocation4], 1
    %s2709 = scalar_lea.sflag [#allocation4], 1
    %2710 = vsyncpa %s2709, 1
    %2711 = vsyncpa [#allocation15], 1
    %s2712 = scalar_lea.sflag [#allocation15], 1
    %2713 = vsyncpa %s2712, 1

</llo_original>
